<compile_context>
chip_gen: v7x
topology: tpu7x:2x2x1
jax: 0.10.0
libtpu: 0.0.40
codegen_flags: <defaults>
</compile_context>

<pallas_src>
import jax
import jax.numpy as jnp
from jax.experimental import pallas as pl
from jax.experimental.pallas import tpu as pltpu


# --------------------------------------------------------------------------- #
# Kernel
# --------------------------------------------------------------------------- #
def _encoder_embed_kernel(x_ref, vec_ref, kd_ref, w2_ref, o_ref):
    # x_ref  : [1, 4, K, TILE_L]   stacked (t, v, tau, mask) scalars
    # vec_ref: [8, DP]             packed per-d / per-h parameter rows
    # kd_ref : [3K, D]             rows: kmap_time | kmap_tau | event-emb table
    # w2_ref : [H, D]              FFNN.W (transposed, no bias)
    # o_ref  : [1, K, TILE_L, D]
    K = o_ref.shape[1]
    TL = o_ref.shape[2]
    D = o_ref.shape[3]
    H = w2_ref.shape[0]

    t = x_ref[0, 0]      # [K, TL]
    v = x_ref[0, 1]
    tau = x_ref[0, 2]
    m = x_ref[0, 3]      # 0/1 float mask

    vec = vec_ref[...]                 # [8, DP]
    tw = vec[0, :D]                    # Time_Encoder [linear.w, periodic.w]
    tb = vec[1, :D]                    # Time_Encoder [linear.b, periodic.b]
    vw = vec[2, :D]                    # Value_Encoder weight
    vb = vec[3, :D]                    # Value_Encoder bias
    w1 = vec[4, :H]                    # FFNN.linear weight (input dim = 1)
    b1 = vec[5, :H]                    # FFNN.linear bias
    sel = vec[6, :D]                   # 1.0 on the "linear" lane (d == 0)

    kd = kd_ref[...]                   # [3K, D]
    km_t = kd[:K]                      # Time_Encoder.k_map
    km_tau = kd[K:2 * K]               # MLP_Tau_Encoder.k_map
    etab = kd[2 * K:]                  # embedding rows for types 1..K

    m3 = m[:, :, None]                 # [K, TL, 1]

    # ---- Time_Encoder: cat([linear(t), sin(periodic(t))], -1) * k_map (no mask) ----
    raw = t[:, :, None] * tw[None, None, :] + tb[None, None, :]        # [K, TL, D]
    acc = jnp.where(sel[None, None, :] > 0.5, raw, jnp.sin(raw)) * km_t[:, None, :]

    # ---- Value_Encoder: Linear(1 -> D)(v) * mask ----
    acc = acc + (v[:, :, None] * vw[None, None, :] + vb[None, None, :]) * m3

    # ---- Event_Encoder: Embedding((k+1)*mask, padding_idx=0) == mask * E[k+1] ----
    # (valid because mask is {0,1} and embedding row 0 (PAD) is exactly zero)
    acc = acc + m3 * etab[:, None, :]

    # ---- MLP_Tau_Encoder: W2(tanh(W1*tau + b1)) * k_map * mask ----
    # MXU matmul over flattened (k, l) rows; reshapes touch leading dims only.
    h = jnp.tanh(tau[:, :, None] * w1[None, None, :] + b1[None, None, :])   # [K, TL, H]
    tau_lin = jnp.dot(h.reshape(K * TL, H), w2_ref[...],
                      preferred_element_type=jnp.float32).reshape(K, TL, D)
    acc = acc + tau_lin * (km_tau[:, None, :] * m3)

    o_ref[0] = acc.astype(o_ref.dtype)


# --------------------------------------------------------------------------- #
# Wrapper
# --------------------------------------------------------------------------- #
def _choose_tile_l(L, K, D, budget_bytes=2 << 20):
    """Largest L-tile whose [K, TILE_L, D] f32 output block fits ~2 MiB."""
    per_l = K * D * 4
    max_l = max(1, budget_bytes // per_l)
    if L <= max_l:
        return L
    # prefer multiples of 128 that divide L (keeps input lane dim aligned)
    t = (max_l // 128) * 128
    while t >= 128:
        if L % t == 0:
            return t
        t -= 128
    return L  # fallback: single tile along L


def encoder_embeddings(event_time, event_value, non_pad_mask, tau, packed,
                       out_dtype=jnp.float32):
    """Inputs are PyTorch-layout [B, L, K] float32.  Returns [B, K, L, D]."""
    B, L, K = event_time.shape
    D = packed["kd"].shape[1]
    H = packed["w2"].shape[0]
    DP = packed["vec"].shape[1]
    assert packed["kd"].shape[0] == 3 * K

    TILE_L = _choose_tile_l(L, K, D)
    grid = (B, L // TILE_L)

    # Single fused relayout of the small scalar inputs:
    # four 'b l k' arrays -> one [B, 4, K, L] array (one input DMA stream).
    x = jnp.transpose(
        jnp.stack([event_time, event_value, tau, non_pad_mask], axis=1),
        (0, 1, 3, 2))

    return pl.pallas_call(
        _encoder_embed_kernel,
        out_shape=jax.ShapeDtypeStruct((B, K, L, D), out_dtype),
        grid=grid,
        in_specs=[
            pl.BlockSpec((1, 4, K, TILE_L), lambda b, l: (b, 0, 0, l)),
            pl.BlockSpec((8, DP), lambda b, l: (0, 0)),
            pl.BlockSpec((3 * K, D), lambda b, l: (0, 0)),
            pl.BlockSpec((H, D), lambda b, l: (0, 0)),
        ],
        # Lane-dense when D % 128 == 0 (the config used here).
        out_specs=pl.BlockSpec((1, K, TILE_L, D), lambda b, l: (b, 0, l, 0)),
        compiler_params=pltpu.CompilerParams(
            dimension_semantics=("parallel", "parallel"),
            vmem_limit_bytes=48 * 1024 * 1024),
    )(x, packed["vec"], packed["kd"], packed["w2"])


# --------------------------------------------------------------------------- #
# Parameters (synthetic, matching the PyTorch module shapes) + packing
# --------------------------------------------------------------------------- #
def init_params(key, num_types, d_model, hid_dim=16):
    D, K, H = d_model, num_types, hid_dim
    ks = jax.random.split(key, 10)
    per_w = 0.1 * jax.random.normal(ks[0], (D - 1,))      # Time_Encoder.periodic
    per_b = 0.1 * jax.random.normal(ks[1], (D - 1,))
    lin_w = 0.1 * jax.random.normal(ks[2], (1,))           # Time_Encoder.linear
    lin_b = 0.1 * jax.random.normal(ks[3], (1,))
    time_w = jnp.concatenate([lin_w, per_w])
    time_b = jnp.concatenate([lin_b, per_b])

    val_w = 0.1 * jax.random.normal(ks[4], (D,))           # Value_Encoder.encoder
    val_b = 0.01 * jnp.ones((D,), jnp.float32)

    tau_w1 = 0.1 * jax.random.normal(ks[5], (H,))          # FFNN.linear
    tau_b1 = 0.01 * jnp.ones((H,), jnp.float32)
    tau_w2 = 0.1 * jax.random.normal(ks[6], (H, D))        # FFNN.W (stored transposed)

    emb = 0.1 * jax.random.normal(ks[7], (K + 1, D))       # Event_Encoder.event_emb
    emb = emb.at[0].set(0.0)                                # padding_idx = PAD = 0
    etab = emb[1:]

    # learnable k_maps (ones at init in PyTorch; randomized here so the test
    # actually validates the multiplies)
    kmap_time = 1.0 + 0.1 * jax.random.normal(ks[8], (K, D))
    kmap_tau = 1.0 + 0.1 * jax.random.normal(ks[9], (K, D))

    return dict(time_w=time_w, time_b=time_b, val_w=val_w, val_b=val_b,
                tau_w1=tau_w1, tau_b1=tau_b1, tau_w2=tau_w2,
                kmap_time=kmap_time, kmap_tau=kmap_tau, etab=etab)


def pack_params(p):
    """Pack the small parameter vectors into two arrays (2 resident DMAs)."""
    D = p["time_w"].shape[0]
    H = p["tau_w1"].shape[0]
    DP = max(D, H)

    def row(v):
        return jnp.pad(v.astype(jnp.float32), (0, DP - v.shape[0]))

    sel = jnp.zeros((D,), jnp.float32).at[0].set(1.0)       # lane-0 "linear" selector
    vec = jnp.stack([row(p["time_w"]), row(p["time_b"]),
                     row(p["val_w"]), row(p["val_b"]),
                     row(p["tau_w1"]), row(p["tau_b1"]),
                     row(sel), jnp.zeros((DP,), jnp.float32)], axis=0)   # [8, DP]
    kd = jnp.concatenate([p["kmap_time"], p["kmap_tau"], p["etab"]], axis=0)  # [3K, D]
    return dict(vec=vec, kd=kd, w2=p["tau_w2"].astype(jnp.float32))


# --------------------------------------------------------------------------- #
# Pure-JAX reference (mirrors the PyTorch embedding stage)
# --------------------------------------------------------------------------- #
def reference(event_time, event_value, mask, tau, p):
    D = p["time_w"].shape[0]
    m = mask[..., None]                                                   # [B,L,K,1]
    raw = event_time[..., None] * p["time_w"] + p["time_b"]               # [B,L,K,D]
    d_idx = jnp.arange(D)
    tem = jnp.where(d_idx == 0, raw, jnp.sin(raw)) * p["kmap_time"][None, None]
    val = (event_value[..., None] * p["val_w"] + p["val_b"]) * m
    h = jnp.tanh(tau[..., None] * p["tau_w1"] + p["tau_b1"])
    tau_emb = jnp.einsum("blkh,hd->blkd", h, p["tau_w2"]) * p["kmap_tau"][None, None] * m
    ev = m * p["etab"][None, None]
    out = tem + val + tau_emb + ev                                        # [B,L,K,D]
    return jnp.transpose(out, (0, 2, 1, 3))                               # -> [B,K,L,D]


# --------------------------------------------------------------------------- #
if __name__ == "__main__":
    B, L, K, D, H = 2, 16, 4, 128, 16      # batch, seq, num_types, d_model, tau hid_dim
    key = jax.random.PRNGKey(0)
    k1, k2, k3, k4, kp = jax.random.split(key, 5)
    event_time = jax.random.uniform(k1, (B, L, K), jnp.float32)
    event_value = jax.random.normal(k2, (B, L, K), jnp.float32)
    tau = jax.random.uniform(k3, (B, L, K), jnp.float32)
    non_pad_mask = (jax.random.uniform(k4, (B, L, K)) > 0.3).astype(jnp.float32)

    params = init_params(kp, K, D, H)
    packed = pack_params(params)

    out = encoder_embeddings(event_time, event_value, non_pad_mask, tau, packed)
    out = jax.block_until_ready(out)

    ref = reference(event_time, event_value, non_pad_mask, tau, params)
    assert out.shape == (B, K, L, D)
    err = float(jnp.max(jnp.abs(out - ref)))
    assert err < 1e-3, err

    # bf16-store variant (halves HBM write traffic on v6e/v7x; f32 accumulation inside)
    out_bf16 = encoder_embeddings(event_time, event_value, non_pad_mask, tau, packed,
                                  out_dtype=jnp.bfloat16)
    out_bf16 = jax.block_until_ready(out_bf16)
    assert out_bf16.shape == (B, K, L, D) and out_bf16.dtype == jnp.bfloat16
    assert bool(jnp.all(jnp.isfinite(out_bf16.astype(jnp.float32))))

    print("KERNEL_OK")
</pallas_src>

<mosaic_0001>
module attributes {stable_mosaic.version = 11 : i64} {
  func.func @_encoder_embed_kernel(%arg0: i32, %arg1: i32, %arg2: memref<1x4x4x16xf32, #tpu.memory_space<vmem>>, %arg3: memref<8x128xf32, #tpu.memory_space<vmem>>, %arg4: memref<12x128xf32, #tpu.memory_space<vmem>>, %arg5: memref<16x128xf32, #tpu.memory_space<vmem>>, %arg6: memref<1x4x16x128xf32, #tpu.memory_space<vmem>>) attributes {dimension_semantics = [#tpu.dimension_semantics<parallel>, #tpu.dimension_semantics<parallel>], iteration_bounds = array<i64: 2, 1>, scalar_prefetch = 0 : i64, scratch_operands = 0 : i64, tpu.core_type = #tpu.core_type<tc>, window_params = [{transform_indices = @transform_0, window_bounds = array<i64: 1, 4, 4, 16>}, {pipeline_mode = #tpu.pipeline_mode<synchronous>, transform_indices = @transform_1, window_bounds = array<i64: 8, 128>}, {pipeline_mode = #tpu.pipeline_mode<synchronous>, transform_indices = @transform_2, window_bounds = array<i64: 12, 128>}, {pipeline_mode = #tpu.pipeline_mode<synchronous>, transform_indices = @transform_3, window_bounds = array<i64: 16, 128>}, {transform_indices = @transform_4, window_bounds = array<i64: 1, 4, 16, 128>}]} {
    %c0 = arith.constant 0 : index
    %c0_0 = arith.constant 0 : index
    %c0_1 = arith.constant 0 : index
    %c0_2 = arith.constant 0 : index
    %0 = vector.load %arg2[%c0, %c0_0, %c0_1, %c0_2] : memref<1x4x4x16xf32, #tpu.memory_space<vmem>>, vector<1x1x4x16xf32>
    %1 = vector.shape_cast %0 : vector<1x1x4x16xf32> to vector<4x16xf32>
    %c0_3 = arith.constant 0 : index
    %c1 = arith.constant 1 : index
    %c0_4 = arith.constant 0 : index
    %c0_5 = arith.constant 0 : index
    %2 = vector.load %arg2[%c0_3, %c1, %c0_4, %c0_5] : memref<1x4x4x16xf32, #tpu.memory_space<vmem>>, vector<1x1x4x16xf32>
    %3 = vector.shape_cast %2 : vector<1x1x4x16xf32> to vector<4x16xf32>
    %c0_6 = arith.constant 0 : index
    %c2 = arith.constant 2 : index
    %c0_7 = arith.constant 0 : index
    %c0_8 = arith.constant 0 : index
    %4 = vector.load %arg2[%c0_6, %c2, %c0_7, %c0_8] : memref<1x4x4x16xf32, #tpu.memory_space<vmem>>, vector<1x1x4x16xf32>
    %5 = vector.shape_cast %4 : vector<1x1x4x16xf32> to vector<4x16xf32>
    %c0_9 = arith.constant 0 : index
    %c3 = arith.constant 3 : index
    %c0_10 = arith.constant 0 : index
    %c0_11 = arith.constant 0 : index
    %6 = vector.load %arg2[%c0_9, %c3, %c0_10, %c0_11] : memref<1x4x4x16xf32, #tpu.memory_space<vmem>>, vector<1x1x4x16xf32>
    %7 = vector.shape_cast %6 : vector<1x1x4x16xf32> to vector<4x16xf32>
    %c0_12 = arith.constant 0 : index
    %c0_13 = arith.constant 0 : index
    %8 = vector.load %arg3[%c0_12, %c0_13] : memref<8x128xf32, #tpu.memory_space<vmem>>, vector<8x128xf32>
    %9 = vector.extract_strided_slice %8 {offsets = [0, 0], sizes = [1, 128], strides = [1, 1]} : vector<8x128xf32> to vector<1x128xf32>
    %10 = vector.shape_cast %9 : vector<1x128xf32> to vector<128xf32>
    %11 = vector.extract_strided_slice %8 {offsets = [1, 0], sizes = [1, 128], strides = [1, 1]} : vector<8x128xf32> to vector<1x128xf32>
    %12 = vector.shape_cast %11 : vector<1x128xf32> to vector<128xf32>
    %13 = vector.extract_strided_slice %8 {offsets = [2, 0], sizes = [1, 128], strides = [1, 1]} : vector<8x128xf32> to vector<1x128xf32>
    %14 = vector.shape_cast %13 : vector<1x128xf32> to vector<128xf32>
    %15 = vector.extract_strided_slice %8 {offsets = [3, 0], sizes = [1, 128], strides = [1, 1]} : vector<8x128xf32> to vector<1x128xf32>
    %16 = vector.shape_cast %15 : vector<1x128xf32> to vector<128xf32>
    %17 = vector.extract_strided_slice %8 {offsets = [4, 0], sizes = [1, 16], strides = [1, 1]} : vector<8x128xf32> to vector<1x16xf32>
    %18 = vector.shape_cast %17 : vector<1x16xf32> to vector<16xf32>
    %19 = vector.extract_strided_slice %8 {offsets = [5, 0], sizes = [1, 16], strides = [1, 1]} : vector<8x128xf32> to vector<1x16xf32>
    %20 = vector.shape_cast %19 : vector<1x16xf32> to vector<16xf32>
    %21 = vector.extract_strided_slice %8 {offsets = [6, 0], sizes = [1, 128], strides = [1, 1]} : vector<8x128xf32> to vector<1x128xf32>
    %22 = vector.shape_cast %21 : vector<1x128xf32> to vector<128xf32>
    %c0_14 = arith.constant 0 : index
    %c0_15 = arith.constant 0 : index
    %23 = vector.load %arg4[%c0_14, %c0_15] : memref<12x128xf32, #tpu.memory_space<vmem>>, vector<12x128xf32>
    %24 = vector.extract_strided_slice %23 {offsets = [0, 0], sizes = [4, 128], strides = [1, 1]} : vector<12x128xf32> to vector<4x128xf32>
    %25 = vector.extract_strided_slice %23 {offsets = [4, 0], sizes = [4, 128], strides = [1, 1]} : vector<12x128xf32> to vector<4x128xf32>
    %26 = vector.extract_strided_slice %23 {offsets = [8, 0], sizes = [4, 128], strides = [1, 1]} : vector<12x128xf32> to vector<4x128xf32>
    %27 = vector.shape_cast %7 : vector<4x16xf32> to vector<4x16x1xf32>
    %28 = vector.shape_cast %1 : vector<4x16xf32> to vector<4x16x1xf32>
    %29 = vector.shape_cast %10 : vector<128xf32> to vector<1x1x128xf32>
    %30 = vector.broadcast %28 : vector<4x16x1xf32> to vector<4x16x128xf32>
    %31 = vector.broadcast %29 : vector<1x1x128xf32> to vector<4x16x128xf32>
    %32 = arith.mulf %30, %31 : vector<4x16x128xf32>
    %33 = vector.shape_cast %12 : vector<128xf32> to vector<1x1x128xf32>
    %34 = vector.broadcast %33 : vector<1x1x128xf32> to vector<4x16x128xf32>
    %35 = arith.addf %32, %34 : vector<4x16x128xf32>
    %36 = vector.shape_cast %22 : vector<128xf32> to vector<1x1x128xf32>
    %cst = arith.constant 5.000000e-01 : f32
    %37 = vector.broadcast %cst : f32 to vector<1x1x128xf32>
    %38 = arith.cmpf ogt, %36, %37 : vector<1x1x128xf32>
    %39 = math.sin %35 : vector<4x16x128xf32>
    %40 = vector.shape_cast %38 : vector<1x1x128xi1> to vector<1x1x128xi1>
    %41 = vector.broadcast %40 : vector<1x1x128xi1> to vector<4x16x128xi1>
    %42 = arith.select %41, %35, %39 : vector<4x16x128xi1>, vector<4x16x128xf32>
    %43 = vector.shape_cast %24 : vector<4x128xf32> to vector<4x1x128xf32>
    %44 = vector.broadcast %43 : vector<4x1x128xf32> to vector<4x16x128xf32>
    %45 = arith.mulf %42, %44 : vector<4x16x128xf32>
    %46 = vector.shape_cast %3 : vector<4x16xf32> to vector<4x16x1xf32>
    %47 = vector.shape_cast %14 : vector<128xf32> to vector<1x1x128xf32>
    %48 = vector.broadcast %46 : vector<4x16x1xf32> to vector<4x16x128xf32>
    %49 = vector.broadcast %47 : vector<1x1x128xf32> to vector<4x16x128xf32>
    %50 = arith.mulf %48, %49 : vector<4x16x128xf32>
    %51 = vector.shape_cast %16 : vector<128xf32> to vector<1x1x128xf32>
    %52 = vector.broadcast %51 : vector<1x1x128xf32> to vector<4x16x128xf32>
    %53 = arith.addf %50, %52 : vector<4x16x128xf32>
    %54 = vector.broadcast %27 : vector<4x16x1xf32> to vector<4x16x128xf32>
    %55 = arith.mulf %53, %54 : vector<4x16x128xf32>
    %56 = arith.addf %45, %55 : vector<4x16x128xf32>
    %57 = vector.shape_cast %26 : vector<4x128xf32> to vector<4x1x128xf32>
    %58 = vector.broadcast %27 : vector<4x16x1xf32> to vector<4x16x128xf32>
    %59 = vector.broadcast %57 : vector<4x1x128xf32> to vector<4x16x128xf32>
    %60 = arith.mulf %58, %59 : vector<4x16x128xf32>
    %61 = arith.addf %56, %60 : vector<4x16x128xf32>
    %62 = vector.shape_cast %5 : vector<4x16xf32> to vector<4x16x1xf32>
    %63 = vector.shape_cast %18 : vector<16xf32> to vector<1x1x16xf32>
    %64 = vector.broadcast %62 : vector<4x16x1xf32> to vector<4x16x16xf32>
    %65 = vector.broadcast %63 : vector<1x1x16xf32> to vector<4x16x16xf32>
    %66 = arith.mulf %64, %65 : vector<4x16x16xf32>
    %67 = vector.shape_cast %20 : vector<16xf32> to vector<1x1x16xf32>
    %68 = vector.broadcast %67 : vector<1x1x16xf32> to vector<4x16x16xf32>
    %69 = arith.addf %66, %68 : vector<4x16x16xf32>
    %70 = math.tanh %69 : vector<4x16x16xf32>
    %71 = vector.shape_cast %70 : vector<4x16x16xf32> to vector<64x16xf32>
    %c0_16 = arith.constant 0 : index
    %c0_17 = arith.constant 0 : index
    %72 = vector.load %arg5[%c0_16, %c0_17] : memref<16x128xf32, #tpu.memory_space<vmem>>, vector<16x128xf32>
    %cst_18 = arith.constant dense<0.000000e+00> : vector<64x128xf32>
    %73 = tpu.matmul %71, %72, %cst_18 {dimension_numbers = #tpu.dot_dimension_numbers<[1], [0], [0], [1], [0, 0, 1, 1], [], []>} : vector<64x16xf32>, vector<16x128xf32>, vector<64x128xf32> -> vector<64x128xf32>
    %74 = vector.shape_cast %73 : vector<64x128xf32> to vector<4x16x128xf32>
    %75 = vector.shape_cast %25 : vector<4x128xf32> to vector<4x1x128xf32>
    %76 = vector.broadcast %75 : vector<4x1x128xf32> to vector<4x16x128xf32>
    %77 = vector.broadcast %27 : vector<4x16x1xf32> to vector<4x16x128xf32>
    %78 = arith.mulf %76, %77 : vector<4x16x128xf32>
    %79 = arith.mulf %74, %78 : vector<4x16x128xf32>
    %80 = arith.addf %61, %79 : vector<4x16x128xf32>
    %c0_19 = arith.constant 0 : index
    %c0_20 = arith.constant 0 : index
    %c0_21 = arith.constant 0 : index
    %c0_22 = arith.constant 0 : index
    %81 = vector.load %arg6[%c0_19, %c0_20, %c0_21, %c0_22] : memref<1x4x16x128xf32, #tpu.memory_space<vmem>>, vector<1x4x16x128xf32>
    %82 = vector.shape_cast %81 : vector<1x4x16x128xf32> to vector<4x16x128xf32>
    %83 = vector.shape_cast %80 : vector<4x16x128xf32> to vector<1x4x16x128xf32>
    tpu.vector_store %arg6[%c0_19, %c0_20, %c0_21, %c0_22], %83 {strides = array<i32>} : memref<1x4x16x128xf32, #tpu.memory_space<vmem>>, vector<1x4x16x128xf32>,
    return
  }
  func.func @transform_0(%arg0: i32, %arg1: i32) -> (i32, i32, i32, i32) {
    %c0_i32 = arith.constant 0 : i32
    %c0_i32_0 = arith.constant 0 : i32
    %c0_i32_1 = arith.constant 0 : i32
    return %arg0, %c0_i32, %c0_i32_0, %arg1 : i32, i32, i32, i32
  }
  func.func @transform_1(%arg0: i32, %arg1: i32) -> (i32, i32) {
    %c0_i32 = arith.constant 0 : i32
    %c0_i32_0 = arith.constant 0 : i32
    %c0_i32_1 = arith.constant 0 : i32
    return %c0_i32, %c0_i32_0 : i32, i32
  }
  func.func @transform_2(%arg0: i32, %arg1: i32) -> (i32, i32) {
    %c0_i32 = arith.constant 0 : i32
    %c0_i32_0 = arith.constant 0 : i32
    %c0_i32_1 = arith.constant 0 : i32
    return %c0_i32, %c0_i32_0 : i32, i32
  }
  func.func @transform_3(%arg0: i32, %arg1: i32) -> (i32, i32) {
    %c0_i32 = arith.constant 0 : i32
    %c0_i32_0 = arith.constant 0 : i32
    %c0_i32_1 = arith.constant 0 : i32
    return %c0_i32, %c0_i32_0 : i32, i32
  }
  func.func @transform_4(%arg0: i32, %arg1: i32) -> (i32, i32, i32, i32) {
    %c0_i32 = arith.constant 0 : i32
    %c0_i32_0 = arith.constant 0 : i32
    %c0_i32_1 = arith.constant 0 : i32
    return %arg0, %c0_i32, %arg1, %c0_i32_0 : i32, i32, i32, i32
  }
}

</mosaic_0001>

<llo_original>
// kernel: tpu_custom_call.1
$region0: #{tpu_custom_call.1}
  #allocation0 [shape = 'u32[]', space=smem, size = 0x4, offset = 0x4, fixed_abs, tag = 'smem constant byte address 0x4 - core index']
  #allocation1 [shape = 'u32[144,128]{1,0:T(1,128)}', space=vmem, size = 0x12000, scoped, tag = 'internal scratch']
  %s0 = inlined_call_operand.hbm [shape: f32[2,4,4,16], index: 0, kind: input, shape index: {}]
  %s1 = inlined_call_operand.hbm [shape: f32[8,128], index: 1, kind: input, shape index: {}]
  %s2 = inlined_call_operand.hbm [shape: f32[12,128], index: 2, kind: input, shape index: {}]
  %s3 = inlined_call_operand.hbm [shape: f32[16,128], index: 3, kind: input, shape index: {}]
  %s4 = inlined_call_operand.hbm [shape: f32[2,4,16,128], index: 4, kind: output, shape index: {}]
  %s5 = sld [smem:[#allocation0]]
  $region65: #{tpu_custom_call.1} parent=0
    _
  %s7 = ssub.s32 1, %s5
  %s8 = scalar_select 0, %s7, %s5
  $region1: #{tpu_custom_call.1} parent=0
    #allocation2 [shape = 'u8[16384]{0}', space=vmem, size = 0x4000, scoped, tag = 'input window, operand 0']
    #allocation3 [shape = 's32[2]{0}', space=sflag, size = 0x8, scoped, tag = 'scoped memory for tpu_custom_call.1']
    #allocation4 [shape = 's32[2]{0}', space=sflag, size = 0x8, scoped, tag = 'scoped memory for tpu_custom_call.1']
    #allocation5 [shape = 'u8[4096]{0}', space=vmem, size = 0x1000, scoped, tag = 'input window, operand 1, single buffered']
    #allocation6 [shape = 's32[1]{0}', space=sflag, size = 0x4, scoped, tag = 'scoped memory for tpu_custom_call.1']
    #allocation7 [shape = 'u8[8192]{0}', space=vmem, size = 0x2000, scoped, tag = 'input window, operand 2, single buffered']
    #allocation8 [shape = 'u8[8192]{0}', space=vmem, size = 0x2000, scoped, tag = 'input window, operand 3, single buffered']
    #allocation9 [shape = 's32[1]{0}', space=sflag, size = 0x4, scoped, tag = 'scoped memory for tpu_custom_call.1']
    #allocation10 [shape = 'u8[65536]{0}', space=vmem, size = 0x10000, scoped, tag = 'output window, operand 0']
    %9 = vsyncpa [#allocation3], 0
    %s10 = scalar_lea.sflag [#allocation3], 1
    %11 = vsyncpa %s10, 0
    %12 = vsyncpa [#allocation6], 0
    %13 = vsyncpa [#allocation9], 0
    %14 = vsyncpa [#allocation4], 0
    %s15 = scalar_lea.sflag [#allocation4], 1
    %16 = vsyncpa %s15, 0
    loop: start=0, step=1, limit=4
    $region2: #{tpu_custom_call.1} parent=1 // loop_pre_header
      _
    $region3: #{tpu_custom_call.1} parent=1 // loop_header
      %s18 = sphi 0, %s22
      %p19 = scmp.ge.s32.totalorder %s18, 4
      %s25 = sphi 0, %s37
      %s26 = sphi 0, %s33
      %s27 = sphi 0, %s25
      %s28 = sphi 0, %s26
      %s29 = sphi 0, %s27
      %s30 = sphi 0, %s28
      %s42 = sphi 0, %s44
      %s45 = sphi 0, %s42
      %s46 = sphi 0, %s45
      %s62 = sphi 0, %s46
      %s66 = sphi 0, %s66
      %s68 = sphi 0, %s66
      %s69 = sphi 0, %s68
      %s83 = sphi 0, %s69
      %s87 = sphi 0, %s87
      %s89 = sphi 0, %s87
      %s90 = sphi 0, %s89
      %s104 = sphi 0, %s90
      %s108 = sphi 0, %s108
      %s110 = sphi 0, %s108
      %s111 = sphi 0, %s110
      %s125 = sphi 0, %s111
      %s133 = sphi 0, %s135
      %s136 = sphi 0, %s133
      %s137 = sphi 0, %s136
      %s153 = sphi 0, %s137
    $region4: #{tpu_custom_call.1} parent=1 // loop_header_branch
      %21 = sbr.rel (%p19) target = $region8
    $region5: #{tpu_custom_call.1} parent=1 // loop_body
      %s23 = ssub.s32 %s18, 1
      %s24 = ssub.s32 %s18, 2
      %s31 = sadd.s32 1, %s26
      %p32 = scmp.ge.s32.totalorder %s31, 1
      %s33 = scalar_select %p32, 0, %s31
      %s34 = sadd.s32 1, %s25
      %s35 = scalar_select %p32, %s34, %s25
      %p36 = scmp.ge.s32.totalorder %s35, 2
      %s37 = scalar_select %p36, 0, %s35
      %s38 = ssub.s32 %s25, %s37
      %s39 = ssub.s32 %s26, %s33
      %s40 = sor.u32 %s38, %s39
      %p41 = scmp.eq.s32.totalorder %s40, 0
      %s43 = sadd.s32 %s42, 1
      %s44 = scalar_select %p41, %s42, %s43
      %p47 = pneg %p41
      %p48 = scmp.eq.s32.totalorder %s18, 1
      %p49 = por %p47, %p48
      %p50 = scmp.ne.s32.totalorder %s42, %s45
      %p51 = scmp.eq.s32.totalorder %s18, 0
      %p52 = por %p50, %p51
      %p53 = scmp.ne.s32.totalorder %s42, %s45
      %p54 = scmp.eq.s32.totalorder %s23, 1
      %p55 = por %p53, %p54
      %p56 = scmp.ne.s32.totalorder %s45, %s46
      %p57 = scmp.eq.s32.totalorder %s23, 0
      %p58 = por %p56, %p57
      %p59 = scmp.ne.s32.totalorder %s45, %s46
      %p60 = scmp.eq.s32.totalorder %s24, 1
      %p61 = por %p59, %p60
      %p63 = scmp.ne.s32.totalorder %s46, %s62
      %p64 = scmp.eq.s32.totalorder %s24, 0
      %p65 = por %p63, %p64
      %s67 = sadd.s32 %s66, 1
      %p70 = scmp.eq.s32.totalorder %s18, 1
      %p71 = scmp.ne.s32.totalorder %s66, %s68
      %p72 = scmp.eq.s32.totalorder %s18, 0
      %p73 = por %p71, %p72
      %p74 = scmp.ne.s32.totalorder %s66, %s68
      %p75 = scmp.eq.s32.totalorder %s23, 1
      %p76 = por %p74, %p75
      %p77 = scmp.ne.s32.totalorder %s68, %s69
      %p78 = scmp.eq.s32.totalorder %s23, 0
      %p79 = por %p77, %p78
      %p80 = scmp.ne.s32.totalorder %s68, %s69
      %p81 = scmp.eq.s32.totalorder %s24, 1
      %p82 = por %p80, %p81
      %p84 = scmp.ne.s32.totalorder %s69, %s83
      %p85 = scmp.eq.s32.totalorder %s24, 0
      %p86 = por %p84, %p85
      %s88 = sadd.s32 %s87, 1
      %p91 = scmp.eq.s32.totalorder %s18, 1
      %p92 = scmp.ne.s32.totalorder %s87, %s89
      %p93 = scmp.eq.s32.totalorder %s18, 0
      %p94 = por %p92, %p93
      %p95 = scmp.ne.s32.totalorder %s87, %s89
      %p96 = scmp.eq.s32.totalorder %s23, 1
      %p97 = por %p95, %p96
      %p98 = scmp.ne.s32.totalorder %s89, %s90
      %p99 = scmp.eq.s32.totalorder %s23, 0
      %p100 = por %p98, %p99
      %p101 = scmp.ne.s32.totalorder %s89, %s90
      %p102 = scmp.eq.s32.totalorder %s24, 1
      %p103 = por %p101, %p102
      %p105 = scmp.ne.s32.totalorder %s90, %s104
      %p106 = scmp.eq.s32.totalorder %s24, 0
      %p107 = por %p105, %p106
      %s109 = sadd.s32 %s108, 1
      %p112 = scmp.eq.s32.totalorder %s18, 1
      %p113 = scmp.ne.s32.totalorder %s108, %s110
      %p114 = scmp.eq.s32.totalorder %s18, 0
      %p115 = por %p113, %p114
      %p116 = scmp.ne.s32.totalorder %s108, %s110
      %p117 = scmp.eq.s32.totalorder %s23, 1
      %p118 = por %p116, %p117
      %p119 = scmp.ne.s32.totalorder %s110, %s111
      %p120 = scmp.eq.s32.totalorder %s23, 0
      %p121 = por %p119, %p120
      %p122 = scmp.ne.s32.totalorder %s110, %s111
      %p123 = scmp.eq.s32.totalorder %s24, 1
      %p124 = por %p122, %p123
      %p126 = scmp.ne.s32.totalorder %s111, %s125
      %p127 = scmp.eq.s32.totalorder %s24, 0
      %p128 = por %p126, %p127
      %s129 = ssub.s32 %s25, %s37
      %s130 = ssub.s32 %s26, %s33
      %s131 = sor.u32 %s129, %s130
      %p132 = scmp.eq.s32.totalorder %s131, 0
      %s134 = sadd.s32 %s133, 1
      %s135 = scalar_select %p132, %s133, %s134
      %p138 = pneg %p132
      %p139 = scmp.eq.s32.totalorder %s18, 1
      %p140 = por %p138, %p139
      %p141 = scmp.ne.s32.totalorder %s133, %s136
      %p142 = scmp.eq.s32.totalorder %s18, 0
      %p143 = por %p141, %p142
      %p144 = scmp.ne.s32.totalorder %s133, %s136
      %p145 = scmp.eq.s32.totalorder %s23, 1
      %p146 = por %p144, %p145
      %p147 = scmp.ne.s32.totalorder %s136, %s137
      %p148 = scmp.eq.s32.totalorder %s23, 0
      %p149 = por %p147, %p148
      %p150 = scmp.ne.s32.totalorder %s136, %s137
      %p151 = scmp.eq.s32.totalorder %s24, 1
      %p152 = por %p150, %p151
      %p154 = scmp.ne.s32.totalorder %s137, %s153
      %p155 = scmp.eq.s32.totalorder %s24, 0
      %p156 = por %p154, %p155
      %p157 = scmp.le.s32.totalorder 1, %s18
      %p158 = scmp.lt.s32.totalorder %s18, 3
      %p159 = pnand %p157, %p158
      %p160 = pneg %p159
      // Predicated region
      $region9: #{tpu_custom_call.1} parent=5 // pred_check
        _
      $region10: #{tpu_custom_call.1} parent=5 // pred_check_branch
        %162 = sbr.rel (%p159) target = $region12
      $region11: #{tpu_custom_call.1} parent=5 // pred_region
        %s163 = ssub.s32 %s18, 1
        // Predicated region
        $region13: #{tpu_custom_call.1} parent=11 // pred_check
          %p164 = pneg %p79
        $region14: #{tpu_custom_call.1} parent=11 // pred_check_branch
          %166 = sbr.rel (%p164) target = $region16
        $region15: #{tpu_custom_call.1} parent=11 // pred_region
          %s168 = ssub.s32 128, 128
          %169 = vsyncadd [#allocation6], %s168
          %s171 = sshll.u32 [#allocation5], 4
          %s172 = int_to_ptr.vmem [resolvable:$true] %s171
          %174 = dma.hbm_to_vmem [thread:$0]  %s1, 128, %s172, [#allocation6]
        $region16: #{tpu_custom_call.1} parent=11 // pred_fallthru
          _
        // Predicated region
        $region17: #{tpu_custom_call.1} parent=11 // pred_check
          %p175 = pneg %p100
        $region18: #{tpu_custom_call.1} parent=11 // pred_check_branch
          %177 = sbr.rel (%p175) target = $region20
        $region19: #{tpu_custom_call.1} parent=11 // pred_region
          %s179 = ssub.s32 256, 256
          %180 = vsyncadd [#allocation6], %s179
          %s181 = sshll.u32 [#allocation7], 4
          %s182 = int_to_ptr.vmem [resolvable:$true] %s181
          %187 = dma.hbm_to_vmem [thread:$0]  %s2, 256, %s182, [#allocation6], 128, 128, 8
        $region20: #{tpu_custom_call.1} parent=11 // pred_fallthru
          _
        // Predicated region
        $region21: #{tpu_custom_call.1} parent=11 // pred_check
          %p188 = pneg %p121
        $region22: #{tpu_custom_call.1} parent=11 // pred_check_branch
          %190 = sbr.rel (%p188) target = $region24
        $region23: #{tpu_custom_call.1} parent=11 // pred_region
          %s192 = ssub.s32 256, 256
          %193 = vsyncadd [#allocation9], %s192
          %s194 = sshll.u32 [#allocation8], 4
          %s195 = int_to_ptr.vmem [resolvable:$true] %s194
          %200 = dma.hbm_to_vmem [thread:$0]  %s3, 256, %s195, [#allocation9], 128, 128, 8
        $region24: #{tpu_custom_call.1} parent=11 // pred_fallthru
          _
      $region12: #{tpu_custom_call.1} parent=5 // pred_fallthru
        _
      %p201 = scmp.lt.s32.totalorder %s18, 2
      // Predicated region
      $region25: #{tpu_custom_call.1} parent=5 // pred_check
        %p202 = pneg %p201
      $region26: #{tpu_custom_call.1} parent=5 // pred_check_branch
        %204 = sbr.rel (%p202) target = $region28
      $region27: #{tpu_custom_call.1} parent=5 // pred_region
        // Predicated region
        $region29: #{tpu_custom_call.1} parent=27 // pred_check
          %p205 = pneg %p52
        $region30: #{tpu_custom_call.1} parent=27 // pred_check_branch
          %207 = sbr.rel (%p205) target = $region32
        $region31: #{tpu_custom_call.1} parent=27 // pred_region
          %s208 = sand.u32 %s42, 1
          %s209 = scalar_lea.sflag [#allocation3], %s208
          %s210 = sand.u32 %s42, 1
          %s211 = smul.addr %s210, 16
          %s212 = scalar_lea.vmem [#allocation2], %s211
          %s214 = ssub.s32 256, 256
          %215 = vsyncadd %s209, %s214
          %s216 = smul.addr %s25, 4
          %s217 = sadd.s32 %s26, %s216
          %s218 = smul.addr %s217, 64
          %s219 = scalar_lea.hbm %s0, %s218
          %s220 = sshll.u32 %s212, 4
          %s221 = int_to_ptr.vmem [resolvable:$true] %s220
          %226 = dma.hbm_to_vmem [thread:$0]  %s219, 256, %s221, %s209, 64, 64, 4
        $region32: #{tpu_custom_call.1} parent=27 // pred_fallthru
          _
      $region28: #{tpu_custom_call.1} parent=5 // pred_fallthru
        _
      %p227 = scmp.le.s32.totalorder 1, %s18
      %p228 = scmp.lt.s32.totalorder %s18, 3
      %p229 = pnand %p227, %p228
      %p230 = pneg %p229
      // Predicated region
      $region33: #{tpu_custom_call.1} parent=5 // pred_check
        _
      $region34: #{tpu_custom_call.1} parent=5 // pred_check_branch
        %232 = sbr.rel (%p229) target = $region36
      $region35: #{tpu_custom_call.1} parent=5 // pred_region
        %s233 = ssub.s32 %s18, 1
        %s234 = sand.u32 %s45, 1
        %s235 = scalar_lea.sflag [#allocation3], %s234
        %s236 = sand.u32 %s45, 1
        %s237 = smul.addr %s236, 16
        %s238 = scalar_lea.vmem [#allocation2], %s237
        // Predicated region
        $region37: #{tpu_custom_call.1} parent=35 // pred_check
          %p239 = pneg %p58
        $region38: #{tpu_custom_call.1} parent=35 // pred_check_branch
          %241 = sbr.rel (%p239) target = $region40
        $region39: #{tpu_custom_call.1} parent=35 // pred_region
          %242 = dma.done %s235, 256
        $region40: #{tpu_custom_call.1} parent=35 // pred_fallthru
          _
        // Predicated region
        $region41: #{tpu_custom_call.1} parent=35 // pred_check
          %p243 = pneg %p79
        $region42: #{tpu_custom_call.1} parent=35 // pred_check_branch
          %245 = sbr.rel (%p243) target = $region44
        $region43: #{tpu_custom_call.1} parent=35 // pred_region
          %246 = dma.done [#allocation6], 128
        $region44: #{tpu_custom_call.1} parent=35 // pred_fallthru
          _
        // Predicated region
        $region45: #{tpu_custom_call.1} parent=35 // pred_check
          %p247 = pneg %p100
        $region46: #{tpu_custom_call.1} parent=35 // pred_check_branch
          %249 = sbr.rel (%p247) target = $region48
        $region47: #{tpu_custom_call.1} parent=35 // pred_region
          %250 = dma.done [#allocation6], 256
        $region48: #{tpu_custom_call.1} parent=35 // pred_fallthru
          _
        // Predicated region
        $region49: #{tpu_custom_call.1} parent=35 // pred_check
          %p251 = pneg %p121
        $region50: #{tpu_custom_call.1} parent=35 // pred_check_branch
          %253 = sbr.rel (%p251) target = $region52
        $region51: #{tpu_custom_call.1} parent=35 // pred_region
          %254 = dma.done [#allocation9], 256
        $region52: #{tpu_custom_call.1} parent=35 // pred_fallthru
          _
        %s255 = sand.u32 %s45, 1
        %s256 = scalar_lea.sflag [#allocation3], %s255
        %s257 = sand.u32 %s45, 1
        %s258 = smul.addr %s257, 16
        %s259 = scalar_lea.vmem [#allocation2], %s258
        %p260 = pneg %p58
        %p261 = pneg %p55
        %p262 = pneg %p79
        %p263 = pneg %p76
        %p264 = pneg %p100
        %p265 = pneg %p97
        %p266 = pneg %p121
        %p267 = pneg %p118
        %p268 = pneg %p149
        %p269 = pneg %p146
        %s270 = sand.u32 %s136, 1
        %s271 = scalar_lea.sflag [#allocation4], %s270
        %s272 = sand.u32 %s136, 1
        %s273 = smul.addr %s272, 64
        %s274 = scalar_lea.vmem [#allocation10], %s273
        %s275 = smul.u32 2, %s28
        %v276 = vld [vmem:[%s238] sm:$0xf]
        %s277 = scalar_lea.vmem %s238, 4 [#allocation2]
        %v278 = vld [vmem:[%s277] sm:$0xf]
        %s279 = scalar_lea.vmem %s238, 8 [#allocation2]
        %v280 = vld [vmem:[%s279] sm:$0xf]
        %s281 = scalar_lea.vmem %s238, 12 [#allocation2]
        %v282 = vld [vmem:[%s281] sm:$0xf]
        %v283 = vld [vmem:[#allocation5] sm:$0xff]
        %v284 = vld [vmem:[#allocation7] sm:$0xff]
        %v285 = vld [vmem:[#allocation7 + $0x8] sm:$0xf]
        %v286 = vlaneseq
        %v287 = vshrl.u32 %v286, 7
        %v288 = vsub.s32 0, %v287
        %v289 = vrot.slane %v282, %v288
        %291 = vbcast.lane.b32.xlu0 %v289, 256
        %v292 = vpop.permute.xlu0 %291
        %s294 = sor.u32 256, 8
        %295 = vbcast.lane.b32.xlu0 %v289, %s294
        %v296 = vpop.permute.xlu0 %295
        %v297 = vlaneseq
        %v298 = vshrl.u32 %v297, 7
        %v299 = vsub.s32 1, %v298
        %v300 = vrot.slane %v282, %v299
        %302 = vbcast.lane.b32.xlu0 %v300, 256
        %v303 = vpop.permute.xlu0 %302
        %s305 = sor.u32 256, 8
        %306 = vbcast.lane.b32.xlu0 %v300, %s305
        %v307 = vpop.permute.xlu0 %306
        %v308 = vlaneseq
        %v309 = vshrl.u32 %v308, 7
        %v310 = vsub.s32 2, %v309
        %v311 = vrot.slane %v282, %v310
        %313 = vbcast.lane.b32.xlu0 %v311, 256
        %v314 = vpop.permute.xlu0 %313
        %s316 = sor.u32 256, 8
        %317 = vbcast.lane.b32.xlu0 %v311, %s316
        %v318 = vpop.permute.xlu0 %317
        %v319 = vlaneseq
        %v320 = vshrl.u32 %v319, 7
        %v321 = vsub.s32 3, %v320
        %v322 = vrot.slane %v282, %v321
        %324 = vbcast.lane.b32.xlu0 %v322, 256
        %v325 = vpop.permute.xlu0 %324
        %s327 = sor.u32 256, 8
        %328 = vbcast.lane.b32.xlu0 %v322, %s327
        %v329 = vpop.permute.xlu0 %328
        %v330 = vlaneseq
        %v331 = vshrl.u32 %v330, 7
        %v332 = vsub.s32 0, %v331
        %v333 = vrot.slane %v276, %v332
        %335 = vbcast.lane.b32.xlu0 %v333, 256
        %v336 = vpop.permute.xlu0 %335
        %s338 = sor.u32 256, 8
        %339 = vbcast.lane.b32.xlu0 %v333, %s338
        %v340 = vpop.permute.xlu0 %339
        %v341 = vlaneseq
        %v342 = vshrl.u32 %v341, 7
        %v343 = vsub.s32 1, %v342
        %v344 = vrot.slane %v276, %v343
        %346 = vbcast.lane.b32.xlu0 %v344, 256
        %v347 = vpop.permute.xlu0 %346
        %s349 = sor.u32 256, 8
        %350 = vbcast.lane.b32.xlu0 %v344, %s349
        %v351 = vpop.permute.xlu0 %350
        %v352 = vlaneseq
        %v353 = vshrl.u32 %v352, 7
        %v354 = vsub.s32 2, %v353
        %v355 = vrot.slane %v276, %v354
        %357 = vbcast.lane.b32.xlu0 %v355, 256
        %v358 = vpop.permute.xlu0 %357
        %s360 = sor.u32 256, 8
        %361 = vbcast.lane.b32.xlu0 %v355, %s360
        %v362 = vpop.permute.xlu0 %361
        %v363 = vlaneseq
        %v364 = vshrl.u32 %v363, 7
        %v365 = vsub.s32 3, %v364
        %v366 = vrot.slane %v276, %v365
        %368 = vbcast.lane.b32.xlu0 %v366, 256
        %v369 = vpop.permute.xlu0 %368
        %s371 = sor.u32 256, 8
        %372 = vbcast.lane.b32.xlu0 %v366, %s371
        %v373 = vpop.permute.xlu0 %372
        %v374 = vlaneseq
        %v375 = vshrl.u32 %v374, 7
        %v376 = vsub.s32 0, %v375
        %v377 = vrot.slane %v283, %v376
        %v378 = vmul.f32 %v336, %v377
        %v379 = vmul.f32 %v340, %v377
        %v380 = vmul.f32 %v347, %v377
        %v381 = vmul.f32 %v351, %v377
        %v382 = vmul.f32 %v358, %v377
        %v383 = vmul.f32 %v362, %v377
        %v384 = vmul.f32 %v369, %v377
        %v385 = vmul.f32 %v373, %v377
        %v386 = vlaneseq
        %v387 = vshrl.u32 %v386, 7
        %v388 = vsub.s32 1, %v387
        %v389 = vrot.slane %v283, %v388
        %v390 = vadd.f32 %v378, %v389
        %v391 = vadd.f32 %v379, %v389
        %v392 = vadd.f32 %v380, %v389
        %v393 = vadd.f32 %v381, %v389
        %v394 = vadd.f32 %v382, %v389
        %v395 = vadd.f32 %v383, %v389
        %v396 = vadd.f32 %v384, %v389
        %v397 = vadd.f32 %v385, %v389
        %vm398 = vcmp.gt.f32.partialorder %v283, 0.5
        %v399 = vand.u32 2147483647, %v390
        %vm400 = vcmp.le.f32.partialorder %v399, 0.7853982
        %vm401 = vcmp.lt.s32.totalorder %v390, 0
        %v402 = vand.u32 %v390, 2139095040
        %v403 = vshrl.u32 %v402, 23
        %v404 = vsub.s32 %v403, 127
        %v405 = vand.u32 2147483647, %v390
        %v406 = vand.u32 %v405, 8388607
        %v407 = vor.u32 %v406, 8388608
        %v408 = vsub.s32 0, %v407
        %v409 = vadd.s32 %v404, 1
        %vm410 = vcmp.gt.s32.totalorder %v409, 0
        %v411 = vsel %vm410, %v409, 0
        %v412 = vshrl.u32 %v411, 5
        %v413 = vand.u32 %v411, 31
        %v414 = vsub.s32 32, %v413
        %v415 = vshrl.u32 683565275, %v414
        %v416 = vshll.u32 683565275, %v413
        %v417 = vshrl.u32 2475754826, %v414
        %v418 = vor.u32 %v416, %v417
        %v419 = vshll.u32 2475754826, %v413
        %v420 = vshrl.u32 2131351028, %v414
        %v421 = vor.u32 %v419, %v420
        %v422 = vshll.u32 2131351028, %v413
        %v423 = vshrl.u32 2102212464, %v414
        %v424 = vor.u32 %v422, %v423
        %v425 = vshll.u32 2102212464, %v413
        %v426 = vshrl.u32 920167782, %v414
        %v427 = vor.u32 %v425, %v426
        %v428 = vshll.u32 920167782, %v413
        %v429 = vshrl.u32 1326507024, %v414
        %v430 = vor.u32 %v428, %v429
        %vm431 = vcmp.lt.s32.totalorder %v412, 1
        %vm432 = vcmp.lt.s32.totalorder %v412, 2
        %vm433 = vcmp.lt.s32.totalorder %v412, 3
        %vm434 = vcmp.lt.s32.totalorder %v412, 4
        %v435 = vsel %vm431, %v415, %v418
        %v436 = vsel %vm434, %v424, 2102212464
        %v437 = vsel %vm433, %v421, %v436
        %v438 = vsel %vm432, %v435, %v437
        %v439 = vsel %vm431, %v418, %v421
        %v440 = vsel %vm434, %v427, 920167782
        %v441 = vsel %vm433, %v424, %v440
        %v442 = vsel %vm432, %v439, %v441
        %v443 = vsel %vm431, %v421, %v424
        %v444 = vsel %vm434, %v430, 1326507024
        %v445 = vsel %vm433, %v427, %v444
        %v446 = vsel %vm432, %v443, %v445
        %v447 = vshll.u32 %v407, 8
        %v448 = vmul.u32.u64.compose %v447, %v446
        %v449 = vextract.low.u32 %v448
        %v450 = vextract.high.u32 %v448
        %v451 = vmul.u32.u64.compose %v447, %v442
        %v452 = vextract.low.u32 %v451
        %v453 = vextract.high.u32 %v451
        %v454 = vmul.u32 %v447, %v438
        %v455 = vadd.s32 %v450, %v452
        %vm456 = vc.u32 %v450, %v452
        %v457 = vadd.s32 %v453, 1
        %v458 = vsel %vm456, %v457, %v453
        %v459 = vadd.s32 %v454, %v458
        %v460 = vadd.s32 %v459, 536870912
        %v461 = vshrl.u32 %v460, 30
        %v462 = vshll.u32 %v461, 30
        %v463 = vsub.s32 %v459, %v462
        %vm464 = vcmp.lt.s32.totalorder %v463, 0
        %v465 = vsub.s32 0, %v463
        %v466 = vsel %vm464, %v465, %v463
        %v467 = vclz %v466
        %v468 = vsub.s32 %v467, 2
        %vm469 = vcmp.gt.s32.totalorder 0, %v468
        %v470 = vsel %vm469, 0, %v468
        %v471 = vsub.s32 32, %v470
        %v472 = vshll.u32 %v463, %v470
        %v473 = vshrl.u32 %v455, %v471
        %v474 = vor.u32 %v472, %v473
        %v475 = vsub.s32 4294967266, %v470
        %v476 = vadd.s32 %v475, 127
        %v477 = vshll.u32 %v476, 23
        %v478 = vor.u32 4788187, %v477
        %v479 = vand.u32 2147483647, %v478
        %v481 = vcvt.s32.f32 %v474
        %v482 = vmul.f32 %v481, %v479
        %v483 = vxor.u32 %v482, 2147483648
        %v484 = vsel %vm401, %v483, %v482
        %v485 = vsub.s32 4, %v461
        %v486 = vsel %vm401, %v485, %v461
        %v487 = vsel %vm400, %v390, %v484
        %v488 = vsel %vm400, 0, %v486
        %v489 = vcosq.f32.pop %v487
        %v490 = vsinq.f32.pop %v487
        %vm491 = vweird.f32 %v390
        %v492 = vadd.s32 %v488, 3
        %v493 = vand.u32 %v492, 3
        %vm494 = vcmp.lt.s32.totalorder %v493, 2
        %vm495 = vcmp.eq.s32.totalorder %v493, 0
        %v496 = vxor.u32 %v490, 2147483648
        %v497 = vsel %vm495, %v489, %v496
        %vm498 = vcmp.eq.s32.totalorder %v493, 2
        %v499 = vxor.u32 %v489, 2147483648
        %v500 = vsel %vm498, %v499, %v490
        %v501 = vsel %vm494, %v497, %v500
        %v502 = vsel %vm491, nan, %v501
        %v503 = vand.u32 2147483647, %v391
        %vm504 = vcmp.le.f32.partialorder %v503, 0.7853982
        %vm505 = vcmp.lt.s32.totalorder %v391, 0
        %v506 = vand.u32 %v391, 2139095040
        %v507 = vshrl.u32 %v506, 23
        %v508 = vsub.s32 %v507, 127
        %v509 = vand.u32 2147483647, %v391
        %v510 = vand.u32 %v509, 8388607
        %v511 = vor.u32 %v510, 8388608
        %v512 = vsub.s32 0, %v511
        %v513 = vadd.s32 %v508, 1
        %vm514 = vcmp.gt.s32.totalorder %v513, 0
        %v515 = vsel %vm514, %v513, 0
        %v516 = vshrl.u32 %v515, 5
        %v517 = vand.u32 %v515, 31
        %v518 = vsub.s32 32, %v517
        %v519 = vshrl.u32 683565275, %v518
        %v520 = vshll.u32 683565275, %v517
        %v521 = vshrl.u32 2475754826, %v518
        %v522 = vor.u32 %v520, %v521
        %v523 = vshll.u32 2475754826, %v517
        %v524 = vshrl.u32 2131351028, %v518
        %v525 = vor.u32 %v523, %v524
        %v526 = vshll.u32 2131351028, %v517
        %v527 = vshrl.u32 2102212464, %v518
        %v528 = vor.u32 %v526, %v527
        %v529 = vshll.u32 2102212464, %v517
        %v530 = vshrl.u32 920167782, %v518
        %v531 = vor.u32 %v529, %v530
        %v532 = vshll.u32 920167782, %v517
        %v533 = vshrl.u32 1326507024, %v518
        %v534 = vor.u32 %v532, %v533
        %vm535 = vcmp.lt.s32.totalorder %v516, 1
        %vm536 = vcmp.lt.s32.totalorder %v516, 2
        %vm537 = vcmp.lt.s32.totalorder %v516, 3
        %vm538 = vcmp.lt.s32.totalorder %v516, 4
        %v539 = vsel %vm535, %v519, %v522
        %v540 = vsel %vm538, %v528, 2102212464
        %v541 = vsel %vm537, %v525, %v540
        %v542 = vsel %vm536, %v539, %v541
        %v543 = vsel %vm535, %v522, %v525
        %v544 = vsel %vm538, %v531, 920167782
        %v545 = vsel %vm537, %v528, %v544
        %v546 = vsel %vm536, %v543, %v545
        %v547 = vsel %vm535, %v525, %v528
        %v548 = vsel %vm538, %v534, 1326507024
        %v549 = vsel %vm537, %v531, %v548
        %v550 = vsel %vm536, %v547, %v549
        %v551 = vshll.u32 %v511, 8
        %v552 = vmul.u32.u64.compose %v551, %v550
        %v553 = vextract.low.u32 %v552
        %v554 = vextract.high.u32 %v552
        %v555 = vmul.u32.u64.compose %v551, %v546
        %v556 = vextract.low.u32 %v555
        %v557 = vextract.high.u32 %v555
        %v558 = vmul.u32 %v551, %v542
        %v559 = vadd.s32 %v554, %v556
        %vm560 = vc.u32 %v554, %v556
        %v561 = vadd.s32 %v557, 1
        %v562 = vsel %vm560, %v561, %v557
        %v563 = vadd.s32 %v558, %v562
        %v564 = vadd.s32 %v563, 536870912
        %v565 = vshrl.u32 %v564, 30
        %v566 = vshll.u32 %v565, 30
        %v567 = vsub.s32 %v563, %v566
        %vm568 = vcmp.lt.s32.totalorder %v567, 0
        %v569 = vsub.s32 0, %v567
        %v570 = vsel %vm568, %v569, %v567
        %v571 = vclz %v570
        %v572 = vsub.s32 %v571, 2
        %vm573 = vcmp.gt.s32.totalorder 0, %v572
        %v574 = vsel %vm573, 0, %v572
        %v575 = vsub.s32 32, %v574
        %v576 = vshll.u32 %v567, %v574
        %v577 = vshrl.u32 %v559, %v575
        %v578 = vor.u32 %v576, %v577
        %v579 = vsub.s32 4294967266, %v574
        %v580 = vadd.s32 %v579, 127
        %v581 = vshll.u32 %v580, 23
        %v582 = vor.u32 4788187, %v581
        %v583 = vand.u32 2147483647, %v582
        %v585 = vcvt.s32.f32 %v578
        %v586 = vmul.f32 %v585, %v583
        %v587 = vxor.u32 %v586, 2147483648
        %v588 = vsel %vm505, %v587, %v586
        %v589 = vsub.s32 4, %v565
        %v590 = vsel %vm505, %v589, %v565
        %v591 = vsel %vm504, %v391, %v588
        %v592 = vsel %vm504, 0, %v590
        %v593 = vcosq.f32.pop %v591
        %v594 = vsinq.f32.pop %v591
        %vm595 = vweird.f32 %v391
        %v596 = vadd.s32 %v592, 3
        %v597 = vand.u32 %v596, 3
        %vm598 = vcmp.lt.s32.totalorder %v597, 2
        %vm599 = vcmp.eq.s32.totalorder %v597, 0
        %v600 = vxor.u32 %v594, 2147483648
        %v601 = vsel %vm599, %v593, %v600
        %vm602 = vcmp.eq.s32.totalorder %v597, 2
        %v603 = vxor.u32 %v593, 2147483648
        %v604 = vsel %vm602, %v603, %v594
        %v605 = vsel %vm598, %v601, %v604
        %v606 = vsel %vm595, nan, %v605
        %v607 = vand.u32 2147483647, %v392
        %vm608 = vcmp.le.f32.partialorder %v607, 0.7853982
        %vm609 = vcmp.lt.s32.totalorder %v392, 0
        %v610 = vand.u32 %v392, 2139095040
        %v611 = vshrl.u32 %v610, 23
        %v612 = vsub.s32 %v611, 127
        %v613 = vand.u32 2147483647, %v392
        %v614 = vand.u32 %v613, 8388607
        %v615 = vor.u32 %v614, 8388608
        %v616 = vsub.s32 0, %v615
        %v617 = vadd.s32 %v612, 1
        %vm618 = vcmp.gt.s32.totalorder %v617, 0
        %v619 = vsel %vm618, %v617, 0
        %v620 = vshrl.u32 %v619, 5
        %v621 = vand.u32 %v619, 31
        %v622 = vsub.s32 32, %v621
        %v623 = vshrl.u32 683565275, %v622
        %v624 = vshll.u32 683565275, %v621
        %v625 = vshrl.u32 2475754826, %v622
        %v626 = vor.u32 %v624, %v625
        %v627 = vshll.u32 2475754826, %v621
        %v628 = vshrl.u32 2131351028, %v622
        %v629 = vor.u32 %v627, %v628
        %v630 = vshll.u32 2131351028, %v621
        %v631 = vshrl.u32 2102212464, %v622
        %v632 = vor.u32 %v630, %v631
        %v633 = vshll.u32 2102212464, %v621
        %v634 = vshrl.u32 920167782, %v622
        %v635 = vor.u32 %v633, %v634
        %v636 = vshll.u32 920167782, %v621
        %v637 = vshrl.u32 1326507024, %v622
        %v638 = vor.u32 %v636, %v637
        %vm639 = vcmp.lt.s32.totalorder %v620, 1
        %vm640 = vcmp.lt.s32.totalorder %v620, 2
        %vm641 = vcmp.lt.s32.totalorder %v620, 3
        %vm642 = vcmp.lt.s32.totalorder %v620, 4
        %v643 = vsel %vm639, %v623, %v626
        %v644 = vsel %vm642, %v632, 2102212464
        %v645 = vsel %vm641, %v629, %v644
        %v646 = vsel %vm640, %v643, %v645
        %v647 = vsel %vm639, %v626, %v629
        %v648 = vsel %vm642, %v635, 920167782
        %v649 = vsel %vm641, %v632, %v648
        %v650 = vsel %vm640, %v647, %v649
        %v651 = vsel %vm639, %v629, %v632
        %v652 = vsel %vm642, %v638, 1326507024
        %v653 = vsel %vm641, %v635, %v652
        %v654 = vsel %vm640, %v651, %v653
        %v655 = vshll.u32 %v615, 8
        %v656 = vmul.u32.u64.compose %v655, %v654
        %v657 = vextract.low.u32 %v656
        %v658 = vextract.high.u32 %v656
        %v659 = vmul.u32.u64.compose %v655, %v650
        %v660 = vextract.low.u32 %v659
        %v661 = vextract.high.u32 %v659
        %v662 = vmul.u32 %v655, %v646
        %v663 = vadd.s32 %v658, %v660
        %vm664 = vc.u32 %v658, %v660
        %v665 = vadd.s32 %v661, 1
        %v666 = vsel %vm664, %v665, %v661
        %v667 = vadd.s32 %v662, %v666
        %v668 = vadd.s32 %v667, 536870912
        %v669 = vshrl.u32 %v668, 30
        %v670 = vshll.u32 %v669, 30
        %v671 = vsub.s32 %v667, %v670
        %vm672 = vcmp.lt.s32.totalorder %v671, 0
        %v673 = vsub.s32 0, %v671
        %v674 = vsel %vm672, %v673, %v671
        %v675 = vclz %v674
        %v676 = vsub.s32 %v675, 2
        %vm677 = vcmp.gt.s32.totalorder 0, %v676
        %v678 = vsel %vm677, 0, %v676
        %v679 = vsub.s32 32, %v678
        %v680 = vshll.u32 %v671, %v678
        %v681 = vshrl.u32 %v663, %v679
        %v682 = vor.u32 %v680, %v681
        %v683 = vsub.s32 4294967266, %v678
        %v684 = vadd.s32 %v683, 127
        %v685 = vshll.u32 %v684, 23
        %v686 = vor.u32 4788187, %v685
        %v687 = vand.u32 2147483647, %v686
        %v689 = vcvt.s32.f32 %v682
        %v690 = vmul.f32 %v689, %v687
        %v691 = vxor.u32 %v690, 2147483648
        %v692 = vsel %vm609, %v691, %v690
        %v693 = vsub.s32 4, %v669
        %v694 = vsel %vm609, %v693, %v669
        %v695 = vsel %vm608, %v392, %v692
        %v696 = vsel %vm608, 0, %v694
        %v697 = vcosq.f32.pop %v695
        %v698 = vsinq.f32.pop %v695
        %vm699 = vweird.f32 %v392
        %v700 = vadd.s32 %v696, 3
        %v701 = vand.u32 %v700, 3
        %vm702 = vcmp.lt.s32.totalorder %v701, 2
        %vm703 = vcmp.eq.s32.totalorder %v701, 0
        %v704 = vxor.u32 %v698, 2147483648
        %v705 = vsel %vm703, %v697, %v704
        %vm706 = vcmp.eq.s32.totalorder %v701, 2
        %v707 = vxor.u32 %v697, 2147483648
        %v708 = vsel %vm706, %v707, %v698
        %v709 = vsel %vm702, %v705, %v708
        %v710 = vsel %vm699, nan, %v709
        %v711 = vand.u32 2147483647, %v393
        %vm712 = vcmp.le.f32.partialorder %v711, 0.7853982
        %vm713 = vcmp.lt.s32.totalorder %v393, 0
        %v714 = vand.u32 %v393, 2139095040
        %v715 = vshrl.u32 %v714, 23
        %v716 = vsub.s32 %v715, 127
        %v717 = vand.u32 2147483647, %v393
        %v718 = vand.u32 %v717, 8388607
        %v719 = vor.u32 %v718, 8388608
        %v720 = vsub.s32 0, %v719
        %v721 = vadd.s32 %v716, 1
        %vm722 = vcmp.gt.s32.totalorder %v721, 0
        %v723 = vsel %vm722, %v721, 0
        %v724 = vshrl.u32 %v723, 5
        %v725 = vand.u32 %v723, 31
        %v726 = vsub.s32 32, %v725
        %v727 = vshrl.u32 683565275, %v726
        %v728 = vshll.u32 683565275, %v725
        %v729 = vshrl.u32 2475754826, %v726
        %v730 = vor.u32 %v728, %v729
        %v731 = vshll.u32 2475754826, %v725
        %v732 = vshrl.u32 2131351028, %v726
        %v733 = vor.u32 %v731, %v732
        %v734 = vshll.u32 2131351028, %v725
        %v735 = vshrl.u32 2102212464, %v726
        %v736 = vor.u32 %v734, %v735
        %v737 = vshll.u32 2102212464, %v725
        %v738 = vshrl.u32 920167782, %v726
        %v739 = vor.u32 %v737, %v738
        %v740 = vshll.u32 920167782, %v725
        %v741 = vshrl.u32 1326507024, %v726
        %v742 = vor.u32 %v740, %v741
        %vm743 = vcmp.lt.s32.totalorder %v724, 1
        %vm744 = vcmp.lt.s32.totalorder %v724, 2
        %vm745 = vcmp.lt.s32.totalorder %v724, 3
        %vm746 = vcmp.lt.s32.totalorder %v724, 4
        %v747 = vsel %vm743, %v727, %v730
        %v748 = vsel %vm746, %v736, 2102212464
        %v749 = vsel %vm745, %v733, %v748
        %v750 = vsel %vm744, %v747, %v749
        %v751 = vsel %vm743, %v730, %v733
        %v752 = vsel %vm746, %v739, 920167782
        %v753 = vsel %vm745, %v736, %v752
        %v754 = vsel %vm744, %v751, %v753
        %v755 = vsel %vm743, %v733, %v736
        %v756 = vsel %vm746, %v742, 1326507024
        %v757 = vsel %vm745, %v739, %v756
        %v758 = vsel %vm744, %v755, %v757
        %v759 = vshll.u32 %v719, 8
        %v760 = vmul.u32.u64.compose %v759, %v758
        %v761 = vextract.low.u32 %v760
        %v762 = vextract.high.u32 %v760
        %v763 = vmul.u32.u64.compose %v759, %v754
        %v764 = vextract.low.u32 %v763
        %v765 = vextract.high.u32 %v763
        %v766 = vmul.u32 %v759, %v750
        %v767 = vadd.s32 %v762, %v764
        %vm768 = vc.u32 %v762, %v764
        %v769 = vadd.s32 %v765, 1
        %v770 = vsel %vm768, %v769, %v765
        %v771 = vadd.s32 %v766, %v770
        %v772 = vadd.s32 %v771, 536870912
        %v773 = vshrl.u32 %v772, 30
        %v774 = vshll.u32 %v773, 30
        %v775 = vsub.s32 %v771, %v774
        %vm776 = vcmp.lt.s32.totalorder %v775, 0
        %v777 = vsub.s32 0, %v775
        %v778 = vsel %vm776, %v777, %v775
        %v779 = vclz %v778
        %v780 = vsub.s32 %v779, 2
        %vm781 = vcmp.gt.s32.totalorder 0, %v780
        %v782 = vsel %vm781, 0, %v780
        %v783 = vsub.s32 32, %v782
        %v784 = vshll.u32 %v775, %v782
        %v785 = vshrl.u32 %v767, %v783
        %v786 = vor.u32 %v784, %v785
        %v787 = vsub.s32 4294967266, %v782
        %v788 = vadd.s32 %v787, 127
        %v789 = vshll.u32 %v788, 23
        %v790 = vor.u32 4788187, %v789
        %v791 = vand.u32 2147483647, %v790
        %v793 = vcvt.s32.f32 %v786
        %v794 = vmul.f32 %v793, %v791
        %v795 = vxor.u32 %v794, 2147483648
        %v796 = vsel %vm713, %v795, %v794
        %v797 = vsub.s32 4, %v773
        %v798 = vsel %vm713, %v797, %v773
        %v799 = vsel %vm712, %v393, %v796
        %v800 = vsel %vm712, 0, %v798
        %v801 = vcosq.f32.pop %v799
        %v802 = vsinq.f32.pop %v799
        %vm803 = vweird.f32 %v393
        %v804 = vadd.s32 %v800, 3
        %v805 = vand.u32 %v804, 3
        %vm806 = vcmp.lt.s32.totalorder %v805, 2
        %vm807 = vcmp.eq.s32.totalorder %v805, 0
        %v808 = vxor.u32 %v802, 2147483648
        %v809 = vsel %vm807, %v801, %v808
        %vm810 = vcmp.eq.s32.totalorder %v805, 2
        %v811 = vxor.u32 %v801, 2147483648
        %v812 = vsel %vm810, %v811, %v802
        %v813 = vsel %vm806, %v809, %v812
        %v814 = vsel %vm803, nan, %v813
        %v815 = vand.u32 2147483647, %v394
        %vm816 = vcmp.le.f32.partialorder %v815, 0.7853982
        %vm817 = vcmp.lt.s32.totalorder %v394, 0
        %v818 = vand.u32 %v394, 2139095040
        %v819 = vshrl.u32 %v818, 23
        %v820 = vsub.s32 %v819, 127
        %v821 = vand.u32 2147483647, %v394
        %v822 = vand.u32 %v821, 8388607
        %v823 = vor.u32 %v822, 8388608
        %v824 = vsub.s32 0, %v823
        %v825 = vadd.s32 %v820, 1
        %vm826 = vcmp.gt.s32.totalorder %v825, 0
        %v827 = vsel %vm826, %v825, 0
        %v828 = vshrl.u32 %v827, 5
        %v829 = vand.u32 %v827, 31
        %v830 = vsub.s32 32, %v829
        %v831 = vshrl.u32 683565275, %v830
        %v832 = vshll.u32 683565275, %v829
        %v833 = vshrl.u32 2475754826, %v830
        %v834 = vor.u32 %v832, %v833
        %v835 = vshll.u32 2475754826, %v829
        %v836 = vshrl.u32 2131351028, %v830
        %v837 = vor.u32 %v835, %v836
        %v838 = vshll.u32 2131351028, %v829
        %v839 = vshrl.u32 2102212464, %v830
        %v840 = vor.u32 %v838, %v839
        %v841 = vshll.u32 2102212464, %v829
        %v842 = vshrl.u32 920167782, %v830
        %v843 = vor.u32 %v841, %v842
        %v844 = vshll.u32 920167782, %v829
        %v845 = vshrl.u32 1326507024, %v830
        %v846 = vor.u32 %v844, %v845
        %vm847 = vcmp.lt.s32.totalorder %v828, 1
        %vm848 = vcmp.lt.s32.totalorder %v828, 2
        %vm849 = vcmp.lt.s32.totalorder %v828, 3
        %vm850 = vcmp.lt.s32.totalorder %v828, 4
        %v851 = vsel %vm847, %v831, %v834
        %v852 = vsel %vm850, %v840, 2102212464
        %v853 = vsel %vm849, %v837, %v852
        %v854 = vsel %vm848, %v851, %v853
        %v855 = vsel %vm847, %v834, %v837
        %v856 = vsel %vm850, %v843, 920167782
        %v857 = vsel %vm849, %v840, %v856
        %v858 = vsel %vm848, %v855, %v857
        %v859 = vsel %vm847, %v837, %v840
        %v860 = vsel %vm850, %v846, 1326507024
        %v861 = vsel %vm849, %v843, %v860
        %v862 = vsel %vm848, %v859, %v861
        %v863 = vshll.u32 %v823, 8
        %v864 = vmul.u32.u64.compose %v863, %v862
        %v865 = vextract.low.u32 %v864
        %v866 = vextract.high.u32 %v864
        %v867 = vmul.u32.u64.compose %v863, %v858
        %v868 = vextract.low.u32 %v867
        %v869 = vextract.high.u32 %v867
        %v870 = vmul.u32 %v863, %v854
        %v871 = vadd.s32 %v866, %v868
        %vm872 = vc.u32 %v866, %v868
        %v873 = vadd.s32 %v869, 1
        %v874 = vsel %vm872, %v873, %v869
        %v875 = vadd.s32 %v870, %v874
        %v876 = vadd.s32 %v875, 536870912
        %v877 = vshrl.u32 %v876, 30
        %v878 = vshll.u32 %v877, 30
        %v879 = vsub.s32 %v875, %v878
        %vm880 = vcmp.lt.s32.totalorder %v879, 0
        %v881 = vsub.s32 0, %v879
        %v882 = vsel %vm880, %v881, %v879
        %v883 = vclz %v882
        %v884 = vsub.s32 %v883, 2
        %vm885 = vcmp.gt.s32.totalorder 0, %v884
        %v886 = vsel %vm885, 0, %v884
        %v887 = vsub.s32 32, %v886
        %v888 = vshll.u32 %v879, %v886
        %v889 = vshrl.u32 %v871, %v887
        %v890 = vor.u32 %v888, %v889
        %v891 = vsub.s32 4294967266, %v886
        %v892 = vadd.s32 %v891, 127
        %v893 = vshll.u32 %v892, 23
        %v894 = vor.u32 4788187, %v893
        %v895 = vand.u32 2147483647, %v894
        %v897 = vcvt.s32.f32 %v890
        %v898 = vmul.f32 %v897, %v895
        %v899 = vxor.u32 %v898, 2147483648
        %v900 = vsel %vm817, %v899, %v898
        %v901 = vsub.s32 4, %v877
        %v902 = vsel %vm817, %v901, %v877
        %v903 = vsel %vm816, %v394, %v900
        %v904 = vsel %vm816, 0, %v902
        %v905 = vcosq.f32.pop %v903
        %v906 = vsinq.f32.pop %v903
        %vm907 = vweird.f32 %v394
        %v908 = vadd.s32 %v904, 3
        %v909 = vand.u32 %v908, 3
        %vm910 = vcmp.lt.s32.totalorder %v909, 2
        %vm911 = vcmp.eq.s32.totalorder %v909, 0
        %v912 = vxor.u32 %v906, 2147483648
        %v913 = vsel %vm911, %v905, %v912
        %vm914 = vcmp.eq.s32.totalorder %v909, 2
        %v915 = vxor.u32 %v905, 2147483648
        %v916 = vsel %vm914, %v915, %v906
        %v917 = vsel %vm910, %v913, %v916
        %v918 = vsel %vm907, nan, %v917
        %v919 = vand.u32 2147483647, %v395
        %vm920 = vcmp.le.f32.partialorder %v919, 0.7853982
        %vm921 = vcmp.lt.s32.totalorder %v395, 0
        %v922 = vand.u32 %v395, 2139095040
        %v923 = vshrl.u32 %v922, 23
        %v924 = vsub.s32 %v923, 127
        %v925 = vand.u32 2147483647, %v395
        %v926 = vand.u32 %v925, 8388607
        %v927 = vor.u32 %v926, 8388608
        %v928 = vsub.s32 0, %v927
        %v929 = vadd.s32 %v924, 1
        %vm930 = vcmp.gt.s32.totalorder %v929, 0
        %v931 = vsel %vm930, %v929, 0
        %v932 = vshrl.u32 %v931, 5
        %v933 = vand.u32 %v931, 31
        %v934 = vsub.s32 32, %v933
        %v935 = vshrl.u32 683565275, %v934
        %v936 = vshll.u32 683565275, %v933
        %v937 = vshrl.u32 2475754826, %v934
        %v938 = vor.u32 %v936, %v937
        %v939 = vshll.u32 2475754826, %v933
        %v940 = vshrl.u32 2131351028, %v934
        %v941 = vor.u32 %v939, %v940
        %v942 = vshll.u32 2131351028, %v933
        %v943 = vshrl.u32 2102212464, %v934
        %v944 = vor.u32 %v942, %v943
        %v945 = vshll.u32 2102212464, %v933
        %v946 = vshrl.u32 920167782, %v934
        %v947 = vor.u32 %v945, %v946
        %v948 = vshll.u32 920167782, %v933
        %v949 = vshrl.u32 1326507024, %v934
        %v950 = vor.u32 %v948, %v949
        %vm951 = vcmp.lt.s32.totalorder %v932, 1
        %vm952 = vcmp.lt.s32.totalorder %v932, 2
        %vm953 = vcmp.lt.s32.totalorder %v932, 3
        %vm954 = vcmp.lt.s32.totalorder %v932, 4
        %v955 = vsel %vm951, %v935, %v938
        %v956 = vsel %vm954, %v944, 2102212464
        %v957 = vsel %vm953, %v941, %v956
        %v958 = vsel %vm952, %v955, %v957
        %v959 = vsel %vm951, %v938, %v941
        %v960 = vsel %vm954, %v947, 920167782
        %v961 = vsel %vm953, %v944, %v960
        %v962 = vsel %vm952, %v959, %v961
        %v963 = vsel %vm951, %v941, %v944
        %v964 = vsel %vm954, %v950, 1326507024
        %v965 = vsel %vm953, %v947, %v964
        %v966 = vsel %vm952, %v963, %v965
        %v967 = vshll.u32 %v927, 8
        %v968 = vmul.u32.u64.compose %v967, %v966
        %v969 = vextract.low.u32 %v968
        %v970 = vextract.high.u32 %v968
        %v971 = vmul.u32.u64.compose %v967, %v962
        %v972 = vextract.low.u32 %v971
        %v973 = vextract.high.u32 %v971
        %v974 = vmul.u32 %v967, %v958
        %v975 = vadd.s32 %v970, %v972
        %vm976 = vc.u32 %v970, %v972
        %v977 = vadd.s32 %v973, 1
        %v978 = vsel %vm976, %v977, %v973
        %v979 = vadd.s32 %v974, %v978
        %v980 = vadd.s32 %v979, 536870912
        %v981 = vshrl.u32 %v980, 30
        %v982 = vshll.u32 %v981, 30
        %v983 = vsub.s32 %v979, %v982
        %vm984 = vcmp.lt.s32.totalorder %v983, 0
        %v985 = vsub.s32 0, %v983
        %v986 = vsel %vm984, %v985, %v983
        %v987 = vclz %v986
        %v988 = vsub.s32 %v987, 2
        %vm989 = vcmp.gt.s32.totalorder 0, %v988
        %v990 = vsel %vm989, 0, %v988
        %v991 = vsub.s32 32, %v990
        %v992 = vshll.u32 %v983, %v990
        %v993 = vshrl.u32 %v975, %v991
        %v994 = vor.u32 %v992, %v993
        %v995 = vsub.s32 4294967266, %v990
        %v996 = vadd.s32 %v995, 127
        %v997 = vshll.u32 %v996, 23
        %v998 = vor.u32 4788187, %v997
        %v999 = vand.u32 2147483647, %v998
        %v1001 = vcvt.s32.f32 %v994
        %v1002 = vmul.f32 %v1001, %v999
        %v1003 = vxor.u32 %v1002, 2147483648
        %v1004 = vsel %vm921, %v1003, %v1002
        %v1005 = vsub.s32 4, %v981
        %v1006 = vsel %vm921, %v1005, %v981
        %v1007 = vsel %vm920, %v395, %v1004
        %v1008 = vsel %vm920, 0, %v1006
        %v1009 = vcosq.f32.pop %v1007
        %v1010 = vsinq.f32.pop %v1007
        %vm1011 = vweird.f32 %v395
        %v1012 = vadd.s32 %v1008, 3
        %v1013 = vand.u32 %v1012, 3
        %vm1014 = vcmp.lt.s32.totalorder %v1013, 2
        %vm1015 = vcmp.eq.s32.totalorder %v1013, 0
        %v1016 = vxor.u32 %v1010, 2147483648
        %v1017 = vsel %vm1015, %v1009, %v1016
        %vm1018 = vcmp.eq.s32.totalorder %v1013, 2
        %v1019 = vxor.u32 %v1009, 2147483648
        %v1020 = vsel %vm1018, %v1019, %v1010
        %v1021 = vsel %vm1014, %v1017, %v1020
        %v1022 = vsel %vm1011, nan, %v1021
        %v1023 = vand.u32 2147483647, %v396
        %vm1024 = vcmp.le.f32.partialorder %v1023, 0.7853982
        %vm1025 = vcmp.lt.s32.totalorder %v396, 0
        %v1026 = vand.u32 %v396, 2139095040
        %v1027 = vshrl.u32 %v1026, 23
        %v1028 = vsub.s32 %v1027, 127
        %v1029 = vand.u32 2147483647, %v396
        %v1030 = vand.u32 %v1029, 8388607
        %v1031 = vor.u32 %v1030, 8388608
        %v1032 = vsub.s32 0, %v1031
        %v1033 = vadd.s32 %v1028, 1
        %vm1034 = vcmp.gt.s32.totalorder %v1033, 0
        %v1035 = vsel %vm1034, %v1033, 0
        %v1036 = vshrl.u32 %v1035, 5
        %v1037 = vand.u32 %v1035, 31
        %v1038 = vsub.s32 32, %v1037
        %v1039 = vshrl.u32 683565275, %v1038
        %v1040 = vshll.u32 683565275, %v1037
        %v1041 = vshrl.u32 2475754826, %v1038
        %v1042 = vor.u32 %v1040, %v1041
        %v1043 = vshll.u32 2475754826, %v1037
        %v1044 = vshrl.u32 2131351028, %v1038
        %v1045 = vor.u32 %v1043, %v1044
        %v1046 = vshll.u32 2131351028, %v1037
        %v1047 = vshrl.u32 2102212464, %v1038
        %v1048 = vor.u32 %v1046, %v1047
        %v1049 = vshll.u32 2102212464, %v1037
        %v1050 = vshrl.u32 920167782, %v1038
        %v1051 = vor.u32 %v1049, %v1050
        %v1052 = vshll.u32 920167782, %v1037
        %v1053 = vshrl.u32 1326507024, %v1038
        %v1054 = vor.u32 %v1052, %v1053
        %vm1055 = vcmp.lt.s32.totalorder %v1036, 1
        %vm1056 = vcmp.lt.s32.totalorder %v1036, 2
        %vm1057 = vcmp.lt.s32.totalorder %v1036, 3
        %vm1058 = vcmp.lt.s32.totalorder %v1036, 4
        %v1059 = vsel %vm1055, %v1039, %v1042
        %v1060 = vsel %vm1058, %v1048, 2102212464
        %v1061 = vsel %vm1057, %v1045, %v1060
        %v1062 = vsel %vm1056, %v1059, %v1061
        %v1063 = vsel %vm1055, %v1042, %v1045
        %v1064 = vsel %vm1058, %v1051, 920167782
        %v1065 = vsel %vm1057, %v1048, %v1064
        %v1066 = vsel %vm1056, %v1063, %v1065
        %v1067 = vsel %vm1055, %v1045, %v1048
        %v1068 = vsel %vm1058, %v1054, 1326507024
        %v1069 = vsel %vm1057, %v1051, %v1068
        %v1070 = vsel %vm1056, %v1067, %v1069
        %v1071 = vshll.u32 %v1031, 8
        %v1072 = vmul.u32.u64.compose %v1071, %v1070
        %v1073 = vextract.low.u32 %v1072
        %v1074 = vextract.high.u32 %v1072
        %v1075 = vmul.u32.u64.compose %v1071, %v1066
        %v1076 = vextract.low.u32 %v1075
        %v1077 = vextract.high.u32 %v1075
        %v1078 = vmul.u32 %v1071, %v1062
        %v1079 = vadd.s32 %v1074, %v1076
        %vm1080 = vc.u32 %v1074, %v1076
        %v1081 = vadd.s32 %v1077, 1
        %v1082 = vsel %vm1080, %v1081, %v1077
        %v1083 = vadd.s32 %v1078, %v1082
        %v1084 = vadd.s32 %v1083, 536870912
        %v1085 = vshrl.u32 %v1084, 30
        %v1086 = vshll.u32 %v1085, 30
        %v1087 = vsub.s32 %v1083, %v1086
        %vm1088 = vcmp.lt.s32.totalorder %v1087, 0
        %v1089 = vsub.s32 0, %v1087
        %v1090 = vsel %vm1088, %v1089, %v1087
        %v1091 = vclz %v1090
        %v1092 = vsub.s32 %v1091, 2
        %vm1093 = vcmp.gt.s32.totalorder 0, %v1092
        %v1094 = vsel %vm1093, 0, %v1092
        %v1095 = vsub.s32 32, %v1094
        %v1096 = vshll.u32 %v1087, %v1094
        %v1097 = vshrl.u32 %v1079, %v1095
        %v1098 = vor.u32 %v1096, %v1097
        %v1099 = vsub.s32 4294967266, %v1094
        %v1100 = vadd.s32 %v1099, 127
        %v1101 = vshll.u32 %v1100, 23
        %v1102 = vor.u32 4788187, %v1101
        %v1103 = vand.u32 2147483647, %v1102
        %v1105 = vcvt.s32.f32 %v1098
        %v1106 = vmul.f32 %v1105, %v1103
        %v1107 = vxor.u32 %v1106, 2147483648
        %v1108 = vsel %vm1025, %v1107, %v1106
        %v1109 = vsub.s32 4, %v1085
        %v1110 = vsel %vm1025, %v1109, %v1085
        %v1111 = vsel %vm1024, %v396, %v1108
        %v1112 = vsel %vm1024, 0, %v1110
        %v1113 = vcosq.f32.pop %v1111
        %v1114 = vsinq.f32.pop %v1111
        %vm1115 = vweird.f32 %v396
        %v1116 = vadd.s32 %v1112, 3
        %v1117 = vand.u32 %v1116, 3
        %vm1118 = vcmp.lt.s32.totalorder %v1117, 2
        %vm1119 = vcmp.eq.s32.totalorder %v1117, 0
        %v1120 = vxor.u32 %v1114, 2147483648
        %v1121 = vsel %vm1119, %v1113, %v1120
        %vm1122 = vcmp.eq.s32.totalorder %v1117, 2
        %v1123 = vxor.u32 %v1113, 2147483648
        %v1124 = vsel %vm1122, %v1123, %v1114
        %v1125 = vsel %vm1118, %v1121, %v1124
        %v1126 = vsel %vm1115, nan, %v1125
        %v1127 = vand.u32 2147483647, %v397
        %vm1128 = vcmp.le.f32.partialorder %v1127, 0.7853982
        %vm1129 = vcmp.lt.s32.totalorder %v397, 0
        %v1130 = vand.u32 %v397, 2139095040
        %v1131 = vshrl.u32 %v1130, 23
        %v1132 = vsub.s32 %v1131, 127
        %v1133 = vand.u32 2147483647, %v397
        %v1134 = vand.u32 %v1133, 8388607
        %v1135 = vor.u32 %v1134, 8388608
        %v1136 = vsub.s32 0, %v1135
        %v1137 = vadd.s32 %v1132, 1
        %vm1138 = vcmp.gt.s32.totalorder %v1137, 0
        %v1139 = vsel %vm1138, %v1137, 0
        %v1140 = vshrl.u32 %v1139, 5
        %v1141 = vand.u32 %v1139, 31
        %v1142 = vsub.s32 32, %v1141
        %v1143 = vshrl.u32 683565275, %v1142
        %v1144 = vshll.u32 683565275, %v1141
        %v1145 = vshrl.u32 2475754826, %v1142
        %v1146 = vor.u32 %v1144, %v1145
        %v1147 = vshll.u32 2475754826, %v1141
        %v1148 = vshrl.u32 2131351028, %v1142
        %v1149 = vor.u32 %v1147, %v1148
        %v1150 = vshll.u32 2131351028, %v1141
        %v1151 = vshrl.u32 2102212464, %v1142
        %v1152 = vor.u32 %v1150, %v1151
        %v1153 = vshll.u32 2102212464, %v1141
        %v1154 = vshrl.u32 920167782, %v1142
        %v1155 = vor.u32 %v1153, %v1154
        %v1156 = vshll.u32 920167782, %v1141
        %v1157 = vshrl.u32 1326507024, %v1142
        %v1158 = vor.u32 %v1156, %v1157
        %vm1159 = vcmp.lt.s32.totalorder %v1140, 1
        %vm1160 = vcmp.lt.s32.totalorder %v1140, 2
        %vm1161 = vcmp.lt.s32.totalorder %v1140, 3
        %vm1162 = vcmp.lt.s32.totalorder %v1140, 4
        %v1163 = vsel %vm1159, %v1143, %v1146
        %v1164 = vsel %vm1162, %v1152, 2102212464
        %v1165 = vsel %vm1161, %v1149, %v1164
        %v1166 = vsel %vm1160, %v1163, %v1165
        %v1167 = vsel %vm1159, %v1146, %v1149
        %v1168 = vsel %vm1162, %v1155, 920167782
        %v1169 = vsel %vm1161, %v1152, %v1168
        %v1170 = vsel %vm1160, %v1167, %v1169
        %v1171 = vsel %vm1159, %v1149, %v1152
        %v1172 = vsel %vm1162, %v1158, 1326507024
        %v1173 = vsel %vm1161, %v1155, %v1172
        %v1174 = vsel %vm1160, %v1171, %v1173
        %v1175 = vshll.u32 %v1135, 8
        %v1176 = vmul.u32.u64.compose %v1175, %v1174
        %v1177 = vextract.low.u32 %v1176
        %v1178 = vextract.high.u32 %v1176
        %v1179 = vmul.u32.u64.compose %v1175, %v1170
        %v1180 = vextract.low.u32 %v1179
        %v1181 = vextract.high.u32 %v1179
        %v1182 = vmul.u32 %v1175, %v1166
        %v1183 = vadd.s32 %v1178, %v1180
        %vm1184 = vc.u32 %v1178, %v1180
        %v1185 = vadd.s32 %v1181, 1
        %v1186 = vsel %vm1184, %v1185, %v1181
        %v1187 = vadd.s32 %v1182, %v1186
        %v1188 = vadd.s32 %v1187, 536870912
        %v1189 = vshrl.u32 %v1188, 30
        %v1190 = vshll.u32 %v1189, 30
        %v1191 = vsub.s32 %v1187, %v1190
        %vm1192 = vcmp.lt.s32.totalorder %v1191, 0
        %v1193 = vsub.s32 0, %v1191
        %v1194 = vsel %vm1192, %v1193, %v1191
        %v1195 = vclz %v1194
        %v1196 = vsub.s32 %v1195, 2
        %vm1197 = vcmp.gt.s32.totalorder 0, %v1196
        %v1198 = vsel %vm1197, 0, %v1196
        %v1199 = vsub.s32 32, %v1198
        %v1200 = vshll.u32 %v1191, %v1198
        %v1201 = vshrl.u32 %v1183, %v1199
        %v1202 = vor.u32 %v1200, %v1201
        %v1203 = vsub.s32 4294967266, %v1198
        %v1204 = vadd.s32 %v1203, 127
        %v1205 = vshll.u32 %v1204, 23
        %v1206 = vor.u32 4788187, %v1205
        %v1207 = vand.u32 2147483647, %v1206
        %v1209 = vcvt.s32.f32 %v1202
        %v1210 = vmul.f32 %v1209, %v1207
        %v1211 = vxor.u32 %v1210, 2147483648
        %v1212 = vsel %vm1129, %v1211, %v1210
        %v1213 = vsub.s32 4, %v1189
        %v1214 = vsel %vm1129, %v1213, %v1189
        %v1215 = vsel %vm1128, %v397, %v1212
        %v1216 = vsel %vm1128, 0, %v1214
        %v1217 = vcosq.f32.pop %v1215
        %v1218 = vsinq.f32.pop %v1215
        %vm1219 = vweird.f32 %v397
        %v1220 = vadd.s32 %v1216, 3
        %v1221 = vand.u32 %v1220, 3
        %vm1222 = vcmp.lt.s32.totalorder %v1221, 2
        %vm1223 = vcmp.eq.s32.totalorder %v1221, 0
        %v1224 = vxor.u32 %v1218, 2147483648
        %v1225 = vsel %vm1223, %v1217, %v1224
        %vm1226 = vcmp.eq.s32.totalorder %v1221, 2
        %v1227 = vxor.u32 %v1217, 2147483648
        %v1228 = vsel %vm1226, %v1227, %v1218
        %v1229 = vsel %vm1222, %v1225, %v1228
        %v1230 = vsel %vm1219, nan, %v1229
        %v1231 = vsel %vm398, 1, 0
        %v1232 = vlaneseq
        %v1233 = vshrl.u32 %v1232, 7
        %v1234 = vsub.s32 6, %v1233
        %v1235 = vrot.slane %v1231, %v1234
        %vm1236 = vcmp.eq.s32.totalorder %v1235, 1
        %v1237 = vsel %vm1236, %v390, %v502
        %v1238 = vsel %vm1236, %v391, %v606
        %v1239 = vsel %vm1236, %v392, %v710
        %v1240 = vsel %vm1236, %v393, %v814
        %v1241 = vsel %vm1236, %v394, %v918
        %v1242 = vsel %vm1236, %v395, %v1022
        %v1243 = vsel %vm1236, %v396, %v1126
        %v1244 = vsel %vm1236, %v397, %v1230
        %v1247 = vunpack.c.l.s4 1966171168
        %v1248 = vunpack.c.0.s8 %v1247
        %v1249 = vlaneseq
        %v1250 = vshrl.u32 %v1249, 7
        %v1251 = vsub.s32 %v1248, %v1250
        %v1252 = vrot.slane %v284, %v1251
        %v1253 = vcombine.high %v1252, %v1252
        %v1255 = vunpack.c.l.s4 1966171168
        %v1256 = vunpack.c.0.s8 %v1255
        %v1257 = vlaneseq
        %v1258 = vshrl.u32 %v1257, 7
        %v1259 = vsub.s32 %v1256, %v1258
        %v1260 = vrot.slane %v1252, %v1259
        %v1262 = vunpack.c.l.s4 1966171168
        %v1263 = vunpack.c.0.s8 %v1262
        %v1264 = vlaneseq
        %v1265 = vshrl.u32 %v1264, 7
        %v1266 = vsub.s32 %v1263, %v1265
        %v1267 = vrot.slane %v1253, %v1266
        %v1268 = vcombine.high %v1260, %v1260
        %v1269 = vcombine.high %v1267, %v1267
        %v1270 = vlaneseq
        %v1271 = vshrl.u32 %v1270, 7
        %v1272 = vsub.s32 0, %v1271
        %v1273 = vrot.slane %v1260, %v1272
        %v1274 = vlaneseq
        %v1275 = vshrl.u32 %v1274, 7
        %v1276 = vsub.s32 0, %v1275
        %v1277 = vrot.slane %v1267, %v1276
        %v1278 = vlaneseq
        %v1279 = vshrl.u32 %v1278, 7
        %v1280 = vsub.s32 0, %v1279
        %v1281 = vrot.slane %v1268, %v1280
        %v1282 = vlaneseq
        %v1283 = vshrl.u32 %v1282, 7
        %v1284 = vsub.s32 0, %v1283
        %v1285 = vrot.slane %v1269, %v1284
        %v1290 = vmul.f32 %v1237, %v1273
        %v1291 = vmul.f32 %v1238, %v1273
        %v1292 = vmul.f32 %v1239, %v1277
        %v1293 = vmul.f32 %v1240, %v1277
        %v1294 = vmul.f32 %v1241, %v1281
        %v1295 = vmul.f32 %v1242, %v1281
        %v1296 = vmul.f32 %v1243, %v1285
        %v1297 = vmul.f32 %v1244, %v1285
        %v1298 = vlaneseq
        %v1299 = vshrl.u32 %v1298, 7
        %v1300 = vsub.s32 0, %v1299
        %v1301 = vrot.slane %v278, %v1300
        %1303 = vbcast.lane.b32.xlu0 %v1301, 256
        %v1304 = vpop.permute.xlu0 %1303
        %s1306 = sor.u32 256, 8
        %1307 = vbcast.lane.b32.xlu0 %v1301, %s1306
        %v1308 = vpop.permute.xlu0 %1307
        %v1309 = vlaneseq
        %v1310 = vshrl.u32 %v1309, 7
        %v1311 = vsub.s32 1, %v1310
        %v1312 = vrot.slane %v278, %v1311
        %1314 = vbcast.lane.b32.xlu0 %v1312, 256
        %v1315 = vpop.permute.xlu0 %1314
        %s1317 = sor.u32 256, 8
        %1318 = vbcast.lane.b32.xlu0 %v1312, %s1317
        %v1319 = vpop.permute.xlu0 %1318
        %v1320 = vlaneseq
        %v1321 = vshrl.u32 %v1320, 7
        %v1322 = vsub.s32 2, %v1321
        %v1323 = vrot.slane %v278, %v1322
        %1325 = vbcast.lane.b32.xlu0 %v1323, 256
        %v1326 = vpop.permute.xlu0 %1325
        %s1328 = sor.u32 256, 8
        %1329 = vbcast.lane.b32.xlu0 %v1323, %s1328
        %v1330 = vpop.permute.xlu0 %1329
        %v1331 = vlaneseq
        %v1332 = vshrl.u32 %v1331, 7
        %v1333 = vsub.s32 3, %v1332
        %v1334 = vrot.slane %v278, %v1333
        %1336 = vbcast.lane.b32.xlu0 %v1334, 256
        %v1337 = vpop.permute.xlu0 %1336
        %s1339 = sor.u32 256, 8
        %1340 = vbcast.lane.b32.xlu0 %v1334, %s1339
        %v1341 = vpop.permute.xlu0 %1340
        %v1342 = vlaneseq
        %v1343 = vshrl.u32 %v1342, 7
        %v1344 = vsub.s32 2, %v1343
        %v1345 = vrot.slane %v283, %v1344
        %v1346 = vmul.f32 %v1304, %v1345
        %v1347 = vmul.f32 %v1308, %v1345
        %v1348 = vmul.f32 %v1315, %v1345
        %v1349 = vmul.f32 %v1319, %v1345
        %v1350 = vmul.f32 %v1326, %v1345
        %v1351 = vmul.f32 %v1330, %v1345
        %v1352 = vmul.f32 %v1337, %v1345
        %v1353 = vmul.f32 %v1341, %v1345
        %v1354 = vlaneseq
        %v1355 = vshrl.u32 %v1354, 7
        %v1356 = vsub.s32 3, %v1355
        %v1357 = vrot.slane %v283, %v1356
        %v1358 = vadd.f32 %v1346, %v1357
        %v1359 = vadd.f32 %v1347, %v1357
        %v1360 = vadd.f32 %v1348, %v1357
        %v1361 = vadd.f32 %v1349, %v1357
        %v1362 = vadd.f32 %v1350, %v1357
        %v1363 = vadd.f32 %v1351, %v1357
        %v1364 = vadd.f32 %v1352, %v1357
        %v1365 = vadd.f32 %v1353, %v1357
        %v1366 = vmul.f32 %v1358, %v292
        %v1367 = vmul.f32 %v1359, %v296
        %v1368 = vmul.f32 %v1360, %v303
        %v1369 = vmul.f32 %v1361, %v307
        %v1370 = vmul.f32 %v1362, %v314
        %v1371 = vmul.f32 %v1363, %v318
        %v1372 = vmul.f32 %v1364, %v325
        %v1373 = vmul.f32 %v1365, %v329
        %v1374 = vadd.f32 %v1290, %v1366
        %v1375 = vadd.f32 %v1291, %v1367
        %v1376 = vadd.f32 %v1292, %v1368
        %v1377 = vadd.f32 %v1293, %v1369
        %v1378 = vadd.f32 %v1294, %v1370
        %v1379 = vadd.f32 %v1295, %v1371
        %v1380 = vadd.f32 %v1296, %v1372
        %v1381 = vadd.f32 %v1297, %v1373
        %v1384 = vunpack.c.l.s4 1966171168
        %v1385 = vunpack.c.0.s8 %v1384
        %v1386 = vlaneseq
        %v1387 = vshrl.u32 %v1386, 7
        %v1388 = vsub.s32 %v1385, %v1387
        %v1389 = vrot.slane %v285, %v1388
        %v1390 = vcombine.high %v1389, %v1389
        %v1392 = vunpack.c.l.s4 1966171168
        %v1393 = vunpack.c.0.s8 %v1392
        %v1394 = vlaneseq
        %v1395 = vshrl.u32 %v1394, 7
        %v1396 = vsub.s32 %v1393, %v1395
        %v1397 = vrot.slane %v1389, %v1396
        %v1399 = vunpack.c.l.s4 1966171168
        %v1400 = vunpack.c.0.s8 %v1399
        %v1401 = vlaneseq
        %v1402 = vshrl.u32 %v1401, 7
        %v1403 = vsub.s32 %v1400, %v1402
        %v1404 = vrot.slane %v1390, %v1403
        %v1405 = vcombine.high %v1397, %v1397
        %v1406 = vcombine.high %v1404, %v1404
        %v1407 = vlaneseq
        %v1408 = vshrl.u32 %v1407, 7
        %v1409 = vsub.s32 0, %v1408
        %v1410 = vrot.slane %v1397, %v1409
        %v1411 = vlaneseq
        %v1412 = vshrl.u32 %v1411, 7
        %v1413 = vsub.s32 0, %v1412
        %v1414 = vrot.slane %v1404, %v1413
        %v1415 = vlaneseq
        %v1416 = vshrl.u32 %v1415, 7
        %v1417 = vsub.s32 0, %v1416
        %v1418 = vrot.slane %v1405, %v1417
        %v1419 = vlaneseq
        %v1420 = vshrl.u32 %v1419, 7
        %v1421 = vsub.s32 0, %v1420
        %v1422 = vrot.slane %v1406, %v1421
        %v1427 = vmul.f32 %v292, %v1410
        %v1428 = vmul.f32 %v296, %v1410
        %v1429 = vmul.f32 %v303, %v1414
        %v1430 = vmul.f32 %v307, %v1414
        %v1431 = vmul.f32 %v314, %v1418
        %v1432 = vmul.f32 %v318, %v1418
        %v1433 = vmul.f32 %v325, %v1422
        %v1434 = vmul.f32 %v329, %v1422
        %v1435 = vadd.f32 %v1374, %v1427
        %v1436 = vadd.f32 %v1375, %v1428
        %v1437 = vadd.f32 %v1376, %v1429
        %v1438 = vadd.f32 %v1377, %v1430
        %v1439 = vadd.f32 %v1378, %v1431
        %v1440 = vadd.f32 %v1379, %v1432
        %v1441 = vadd.f32 %v1380, %v1433
        %v1442 = vadd.f32 %v1381, %v1434
        %v1443 = vlaneseq
        %v1444 = vshrl.u32 %v1443, 7
        %v1445 = vsub.s32 0, %v1444
        %v1446 = vrot.slane %v280, %v1445
        %1448 = vbcast.lane.b32.xlu0 %v1446, 256
        %v1449 = vpop.permute.xlu0 %1448
        %s1451 = sor.u32 256, 8
        %1452 = vbcast.lane.b32.xlu0 %v1446, %s1451
        %v1453 = vpop.permute.xlu0 %1452
        %v1454 = vlaneseq
        %v1455 = vshrl.u32 %v1454, 7
        %v1456 = vsub.s32 1, %v1455
        %v1457 = vrot.slane %v280, %v1456
        %1459 = vbcast.lane.b32.xlu0 %v1457, 256
        %v1460 = vpop.permute.xlu0 %1459
        %s1462 = sor.u32 256, 8
        %1463 = vbcast.lane.b32.xlu0 %v1457, %s1462
        %v1464 = vpop.permute.xlu0 %1463
        %v1465 = vlaneseq
        %v1466 = vshrl.u32 %v1465, 7
        %v1467 = vsub.s32 2, %v1466
        %v1468 = vrot.slane %v280, %v1467
        %1470 = vbcast.lane.b32.xlu0 %v1468, 256
        %v1471 = vpop.permute.xlu0 %1470
        %s1473 = sor.u32 256, 8
        %1474 = vbcast.lane.b32.xlu0 %v1468, %s1473
        %v1475 = vpop.permute.xlu0 %1474
        %v1476 = vlaneseq
        %v1477 = vshrl.u32 %v1476, 7
        %v1478 = vsub.s32 3, %v1477
        %v1479 = vrot.slane %v280, %v1478
        %1481 = vbcast.lane.b32.xlu0 %v1479, 256
        %v1482 = vpop.permute.xlu0 %1481
        %s1484 = sor.u32 256, 8
        %1485 = vbcast.lane.b32.xlu0 %v1479, %s1484
        %v1486 = vpop.permute.xlu0 %1485
        %v1487 = vlaneseq
        %v1488 = vshrl.u32 %v1487, 7
        %v1489 = vsub.s32 4, %v1488
        %v1490 = vrot.slane %v283, %v1489
        %v1491 = vmul.f32 %v1449, %v1490
        %v1492 = vmul.f32 %v1453, %v1490
        %v1493 = vmul.f32 %v1460, %v1490
        %v1494 = vmul.f32 %v1464, %v1490
        %v1495 = vmul.f32 %v1471, %v1490
        %v1496 = vmul.f32 %v1475, %v1490
        %v1497 = vmul.f32 %v1482, %v1490
        %v1498 = vmul.f32 %v1486, %v1490
        %v1499 = vlaneseq
        %v1500 = vshrl.u32 %v1499, 7
        %v1501 = vsub.s32 5, %v1500
        %v1502 = vrot.slane %v283, %v1501
        %v1503 = vadd.f32 %v1491, %v1502
        %v1504 = vadd.f32 %v1492, %v1502
        %v1505 = vadd.f32 %v1493, %v1502
        %v1506 = vadd.f32 %v1494, %v1502
        %v1507 = vadd.f32 %v1495, %v1502
        %v1508 = vadd.f32 %v1496, %v1502
        %v1509 = vadd.f32 %v1497, %v1502
        %v1510 = vadd.f32 %v1498, %v1502
        %v1511 = vtanh.pop %v1503
        %v1512 = vtanh.pop %v1504
        %v1513 = vtanh.pop %v1505
        %v1514 = vtanh.pop %v1506
        %v1515 = vtanh.pop %v1507
        %v1516 = vtanh.pop %v1508
        %v1517 = vtanh.pop %v1509
        %v1518 = vtanh.pop %v1510
        %v1519 = vld [vmem:[#allocation8] sm:$0xff]
        %v1520 = vld [vmem:[#allocation8 + $0x8] sm:$0xff]
        %vm1521 = vcmask 130048
        %v1523 = vsel %vm1521, %v1511, 0
        %v1526 = vsel %vm1521, %v1512, 0
        %v1529 = vsel %vm1521, %v1513, 0
        %v1532 = vsel %vm1521, %v1514, 0
        %v1535 = vsel %vm1521, %v1515, 0
        %v1538 = vsel %vm1521, %v1516, 0
        %v1541 = vsel %vm1521, %v1517, 0
        %v1544 = vsel %vm1521, %v1518, 0
        %1546 = vmatprep.subr.mxu0 0.0
        %1547 = vmatpush1.msra.mxu0 %v1519
        %1548 = vmatprep.subr.mxu0 0.0
        %1549 = vmatpush1.msra.mxu0 %v1520
        %1550 = vmatprep.subr.mxu0 0.0
        %1551 = vmatpush1.msra.mxu0 0.0
        %1552 = vmatprep.subr.mxu0 0.0
        %1553 = vmatpush1.msra.mxu0 0.0
        %1554 = vmatprep.subr.mxu0 0.0
        %1555 = vmatpush1.msra.mxu0 0.0
        %1556 = vmatprep.subr.mxu0 0.0
        %1557 = vmatpush1.msra.mxu0 0.0
        %1558 = vmatprep.subr.mxu0 0.0
        %1559 = vmatpush1.msra.mxu0 0.0
        %1560 = vmatprep.subr.mxu0 0.0
        %1561 = vmatpush1.msra.mxu0 0.0
        %1562 = vmatprep.subr.mxu0 0.0
        %1563 = vmatpush1.msra.mxu0 0.0
        %1564 = vmatprep.subr.mxu0 0.0
        %1565 = vmatpush1.msra.mxu0 0.0
        %1566 = vmatprep.subr.mxu0 0.0
        %1567 = vmatpush1.msra.mxu0 0.0
        %1568 = vmatprep.subr.mxu0 0.0
        %1569 = vmatpush1.msra.mxu0 0.0
        %1570 = vmatprep.subr.mxu0 0.0
        %1571 = vmatpush1.msra.mxu0 0.0
        %1572 = vmatprep.subr.mxu0 0.0
        %1573 = vmatpush1.msra.mxu0 0.0
        %1574 = vmatprep.subr.mxu0 0.0
        %1575 = vmatpush1.msra.mxu0 0.0
        %1576 = vmatprep.subr.mxu0 0.0
        %1577 = vmatpush1.msra.mxu0 0.0
        %1578 = vmatprep.subr.mxu0 0.0
        %1579 = vmatpush1.msra.mxu0 0.0
        %1580 = vmatprep.subr.mxu0 0.0
        %1581 = vmatpush1.msra.mxu0 0.0
        %1582 = vmatprep.subr.mxu0 0.0
        %1583 = vmatpush1.msra.mxu0 0.0
        %1584 = vmatprep.subr.mxu0 0.0
        %1585 = vmatpush1.msra.mxu0 0.0
        %1586 = vmatprep.subr.mxu0 0.0
        %1587 = vmatpush1.msra.mxu0 0.0
        %1588 = vmatprep.subr.mxu0 0.0
        %1589 = vmatpush1.msra.mxu0 0.0
        %1590 = vmatprep.subr.mxu0 0.0
        %1591 = vmatpush1.msra.mxu0 0.0
        %1592 = vmatprep.subr.mxu0 0.0
        %1593 = vmatpush1.msra.mxu0 0.0
        %1594 = vmatprep.subr.mxu0 0.0
        %1595 = vmatpush1.msra.mxu0 0.0
        %1596 = vmatprep.subr.mxu0 0.0
        %1597 = vmatpush1.msra.mxu0 0.0
        %1598 = vmatprep.subr.mxu0 0.0
        %1599 = vmatpush1.msra.mxu0 0.0
        %1600 = vmatprep.subr.mxu0 0.0
        %1601 = vmatpush1.msra.mxu0 0.0
        %1602 = vmatprep.subr.mxu0 0.0
        %1603 = vmatpush1.msra.mxu0 0.0
        %1604 = vmatprep.subr.mxu0 0.0
        %1605 = vmatpush1.msra.mxu0 0.0
        %1606 = vmatprep.subr.mxu0 0.0
        %1607 = vmatpush1.msra.mxu0 0.0
        %1608 = vmatprep.subr.mxu0 0.0
        %1609 = vmatpush1.msra.mxu0 0.0
        %1610 = vmatprep.mubr.f32.mxu0 0.0
        %1611 = vmatmul.mubr.f32.gmra.mrb[0].mxu0 %v1523
        %v1612 = vpop.f32.mrb[0].mxu0
        %v1613 = vadd.f32 0.0, %v1612
        %v1614 = vpop.f32.mrb[0].mxu0
        %1615 = vmatprep.mubr.f32.mxu0 0.0
        %1616 = vmatmul.mubr.f32.gmra.mrb[0].mxu0 %v1526
        %v1617 = vpop.f32.mrb[0].mxu0
        %v1618 = vadd.f32 0.0, %v1617
        %v1619 = vpop.f32.mrb[0].mxu0
        %1620 = vmatprep.mubr.f32.mxu0 0.0
        %1621 = vmatmul.mubr.f32.gmra.mrb[0].mxu0 %v1529
        %v1622 = vpop.f32.mrb[0].mxu0
        %v1623 = vadd.f32 0.0, %v1622
        %v1624 = vpop.f32.mrb[0].mxu0
        %1625 = vmatprep.mubr.f32.mxu0 0.0
        %1626 = vmatmul.mubr.f32.gmra.mrb[0].mxu0 %v1532
        %v1627 = vpop.f32.mrb[0].mxu0
        %v1628 = vadd.f32 0.0, %v1627
        %v1629 = vpop.f32.mrb[0].mxu0
        %1630 = vmatprep.mubr.f32.mxu0 0.0
        %1631 = vmatmul.mubr.f32.gmra.mrb[0].mxu0 %v1535
        %v1632 = vpop.f32.mrb[0].mxu0
        %v1633 = vadd.f32 0.0, %v1632
        %v1634 = vpop.f32.mrb[0].mxu0
        %1635 = vmatprep.mubr.f32.mxu0 0.0
        %1636 = vmatmul.mubr.f32.gmra.mrb[0].mxu0 %v1538
        %v1637 = vpop.f32.mrb[0].mxu0
        %v1638 = vadd.f32 0.0, %v1637
        %v1639 = vpop.f32.mrb[0].mxu0
        %1640 = vmatprep.mubr.f32.mxu0 0.0
        %1641 = vmatmul.mubr.f32.gmra.mrb[0].mxu0 %v1541
        %v1642 = vpop.f32.mrb[0].mxu0
        %v1643 = vadd.f32 0.0, %v1642
        %v1644 = vpop.f32.mrb[0].mxu0
        %1645 = vmatprep.mubr.f32.mxu0 0.0
        %1646 = vmatmul.mubr.f32.gmra.mrb[0].mxu0 %v1544
        %v1647 = vpop.f32.mrb[0].mxu0
        %v1648 = vadd.f32 0.0, %v1647
        %v1649 = vpop.f32.mrb[0].mxu0
        %1650 = vdwg.mxu0
        %v1651 = vcombine.high %v284, %v284
        %v1653 = vunpack.c.l.s4 1966171168
        %v1654 = vunpack.c.0.s8 %v1653
        %v1655 = vlaneseq
        %v1656 = vshrl.u32 %v1655, 7
        %v1657 = vsub.s32 %v1654, %v1656
        %v1658 = vrot.slane %v1651, %v1657
        %v1659 = vcombine.high %v1658, %v1658
        %v1661 = vunpack.c.l.s4 1966171168
        %v1662 = vunpack.c.0.s8 %v1661
        %v1663 = vlaneseq
        %v1664 = vshrl.u32 %v1663, 7
        %v1665 = vsub.s32 %v1662, %v1664
        %v1666 = vrot.slane %v1658, %v1665
        %v1668 = vunpack.c.l.s4 1966171168
        %v1669 = vunpack.c.0.s8 %v1668
        %v1670 = vlaneseq
        %v1671 = vshrl.u32 %v1670, 7
        %v1672 = vsub.s32 %v1669, %v1671
        %v1673 = vrot.slane %v1659, %v1672
        %v1674 = vcombine.high %v1666, %v1666
        %v1675 = vcombine.high %v1673, %v1673
        %v1676 = vlaneseq
        %v1677 = vshrl.u32 %v1676, 7
        %v1678 = vsub.s32 0, %v1677
        %v1679 = vrot.slane %v1666, %v1678
        %v1680 = vlaneseq
        %v1681 = vshrl.u32 %v1680, 7
        %v1682 = vsub.s32 0, %v1681
        %v1683 = vrot.slane %v1673, %v1682
        %v1684 = vlaneseq
        %v1685 = vshrl.u32 %v1684, 7
        %v1686 = vsub.s32 0, %v1685
        %v1687 = vrot.slane %v1674, %v1686
        %v1688 = vlaneseq
        %v1689 = vshrl.u32 %v1688, 7
        %v1690 = vsub.s32 0, %v1689
        %v1691 = vrot.slane %v1675, %v1690
        %v1696 = vmul.f32 %v1679, %v292
        %v1697 = vmul.f32 %v1679, %v296
        %v1698 = vmul.f32 %v1683, %v303
        %v1699 = vmul.f32 %v1683, %v307
        %v1700 = vmul.f32 %v1687, %v314
        %v1701 = vmul.f32 %v1687, %v318
        %v1702 = vmul.f32 %v1691, %v325
        %v1703 = vmul.f32 %v1691, %v329
        %v1704 = vmul.f32 %v1613, %v1696
        %v1705 = vmul.f32 %v1618, %v1697
        %v1706 = vmul.f32 %v1623, %v1698
        %v1707 = vmul.f32 %v1628, %v1699
        %v1708 = vmul.f32 %v1633, %v1700
        %v1709 = vmul.f32 %v1638, %v1701
        %v1710 = vmul.f32 %v1643, %v1702
        %v1711 = vmul.f32 %v1648, %v1703
        %v1712 = vadd.f32 %v1435, %v1704
        %v1713 = vadd.f32 %v1436, %v1705
        %v1714 = vadd.f32 %v1437, %v1706
        %v1715 = vadd.f32 %v1438, %v1707
        %v1716 = vadd.f32 %v1439, %v1708
        %v1717 = vadd.f32 %v1440, %v1709
        %v1718 = vadd.f32 %v1441, %v1710
        %v1719 = vadd.f32 %v1442, %v1711
        %1720 = vst [vmem:[%s274] sm:$0xff] %v1712
        %1721 = vst [vmem:[%s274 + $0x8] sm:$0xff] %v1713
        %1722 = vst [vmem:[%s274 + $0x10] sm:$0xff] %v1714
        %1723 = vst [vmem:[%s274 + $0x18] sm:$0xff] %v1715
        %1724 = vst [vmem:[%s274 + $0x20] sm:$0xff] %v1716
        %1725 = vst [vmem:[%s274 + $0x28] sm:$0xff] %v1717
        %1726 = vst [vmem:[%s274 + $0x30] sm:$0xff] %v1718
        %1727 = vst [vmem:[%s274 + $0x38] sm:$0xff] %v1719
        %s1728 = sand.u32 %s136, 1
        %s1729 = scalar_lea.sflag [#allocation4], %s1728
        %s1730 = sand.u32 %s136, 1
        %s1731 = smul.addr %s1730, 64
        %s1732 = scalar_lea.vmem [#allocation10], %s1731
        // Predicated region
        $region53: #{tpu_custom_call.1} parent=35 // pred_check
          %p1733 = pneg %p146
        $region54: #{tpu_custom_call.1} parent=35 // pred_check_branch
          %1735 = sbr.rel (%p1733) target = $region56
        $region55: #{tpu_custom_call.1} parent=35 // pred_region
          %s1736 = smul.u32 2, %s28
          %s1738 = ssub.s32 1024, 1024
          %1739 = vsyncadd %s1729, %s1738
          %s1740 = smul.addr %s27, 8
          %s1741 = sadd.s32 %s1736, %s1740
          %s1742 = smul.addr %s1741, 128
          %s1743 = scalar_lea.hbm %s4, %s1742
          %s1744 = sshll.u32 %s1732, 4
          %s1745 = int_to_ptr.vmem [resolvable:$true] %s1744
          %1750 = dma.vmem_to_hbm [thread:$0]  %s1745, 1024, %s1743, %s1729, 128, 128, 8
        $region56: #{tpu_custom_call.1} parent=35 // pred_fallthru
          _
      $region36: #{tpu_custom_call.1} parent=5 // pred_fallthru
        _
      %p1751 = scmp.le.s32.totalorder 2, %s18
      // Predicated region
      $region57: #{tpu_custom_call.1} parent=5 // pred_check
        %p1752 = pneg %p1751
      $region58: #{tpu_custom_call.1} parent=5 // pred_check_branch
        %1754 = sbr.rel (%p1752) target = $region60
      $region59: #{tpu_custom_call.1} parent=5 // pred_region
        %s1755 = ssub.s32 %s18, 2
        // Predicated region
        $region61: #{tpu_custom_call.1} parent=59 // pred_check
          %p1756 = pneg %p152
        $region62: #{tpu_custom_call.1} parent=59 // pred_check_branch
          %1758 = sbr.rel (%p1756) target = $region64
        $region63: #{tpu_custom_call.1} parent=59 // pred_region
          %s1759 = sand.u32 %s137, 1
          %s1760 = scalar_lea.sflag [#allocation4], %s1759
          %s1761 = sand.u32 %s137, 1
          %s1762 = smul.addr %s1761, 64
          %s1763 = scalar_lea.vmem [#allocation10], %s1762
          %1764 = dma.done %s1760, 1024
        $region64: #{tpu_custom_call.1} parent=59 // pred_fallthru
          _
      $region60: #{tpu_custom_call.1} parent=5 // pred_fallthru
        _
    $region6: #{tpu_custom_call.1} parent=1 // loop_footer
      %s22 = sadd.s32 1, %s18
    $region7: #{tpu_custom_call.1} parent=1 // loop_footer_branch
      %17 = sbr.rel target = $region3
    $region8: #{tpu_custom_call.1} parent=1 // loop_exit
      _
    %1765 = vsyncpa [#allocation3], 1
    %s1766 = scalar_lea.sflag [#allocation3], 1
    %1767 = vsyncpa %s1766, 1
    %1768 = vsyncpa [#allocation6], 1
    %1769 = vsyncpa [#allocation9], 1
    %1770 = vsyncpa [#allocation4], 1
    %s1771 = scalar_lea.sflag [#allocation4], 1
    %1772 = vsyncpa %s1771, 1

</llo_original>
